<compile_context>
chip_gen: v6e
topology: v6e:2x2x1
jax: 0.10.0
libtpu: 0.0.40
codegen_flags: <defaults>
</compile_context>

<pallas_src>
import numpy as np
import jax
import jax.numpy as jnp
from jax.experimental import pallas as pl
from jax.experimental.pallas import tpu as pltpu

# Fixed graph from the PyTorch script (8 nodes, 36 directed edges incl. self loops).
EDGE_INDEX = np.array(
    [[0, 0, 0, 0, 1, 1, 1, 1, 1, 2, 2, 2, 2, 3, 3, 3, 3, 3, 4, 4, 4, 4, 5, 5,
      5, 5, 5, 6, 6, 6, 6, 7, 7, 7, 7, 7],
     [0, 1, 2, 7, 0, 1, 2, 3, 7, 0, 1, 2, 3, 1, 2, 3, 4, 5, 3, 4, 5, 6, 3, 4,
      5, 6, 7, 4, 5, 6, 7, 0, 1, 5, 6, 7]], dtype=np.int32)

NUM_NODES = 8            # nodes per sample (one `data` object)
GRAPHS_PER_SAMPLE = 2    # len(data.y): data.batch = [0]*4 + [1]*4
FEAT_IN = 80
LANES = 128
NEG_PAD = -1e30

# Batched tiling: 16 samples per grid step -> M = 128 node rows per MXU pass.
# (On v6e/v7x this could be bumped to 32 samples -> M = 256 to match the
#  2x256x256 MXU; 128 is correct & efficient on all of v5e/v6e/v7x.)
SAMPLES_PER_TILE = 16
TILE_NODES = SAMPLES_PER_TILE * NUM_NODES            # 128
TILE_OUT = SAMPLES_PER_TILE * GRAPHS_PER_SAMPLE      # 32

# Static row offsets into the bf16 parameter slab (all multiples of 16 so every
# ref view below is a sublane-aligned bf16 slice).
R_LBLK = 0      # [128, 128]  block-diag scaled Laplacian (16 copies of 8x8 L_hat)
R_POOL = 128    # [32,  128]  block-diag pooling matrix (16 copies of [2,8] pool)
R_W1A = 160     # [80,  128]  conv1 W0 (real cols 0:16)
R_W1B = 240     # [80,  128]  conv1 W1
R_B1 = 320      # [16,  128]  conv1 bias in row 0 (cols 0:16)
R_W2A = 336     # [128, 128]  conv2 W0 (real 16x32, zero-padded K)
R_W2B = 464     # [128, 128]  conv2 W1
R_B2 = 592      # [16,  128]  conv2 bias (cols 0:32)
R_W3A = 608     # [128, 128]  conv3 W0 (real 32x64, zero-padded K)
R_W3B = 736     # [128, 128]  conv3 W1
R_B3 = 864      # [16,  128]  conv3 bias (cols 0:64)
R_WFC = 880     # [128, 128]  fused fc weight (real 64x5, zero-padded)
R_BFC = 1008    # [16,  128]  fused fc bias in row 0 (cols 0:5; cols 5:128 = -1e30)
SLAB_ROWS = 1024


def build_scaled_laplacian(edge_index, edge_weight, num_nodes):
    """Dense L_hat matching PyG ChebConv.__norm__ (normalization='sym', lambda_max=2).

    L = I - D^{-1/2} A D^{-1/2};  L_hat = 2L/lambda_max - I = L - I
    => diag = 0, off-diag = -D^{-1/2} A D^{-1/2}.
    Message passing aggregates at target (edge_index[1]) from source
    (edge_index[0]), so the dense operator is M[target, source].
    """
    row, col = edge_index[0], edge_index[1]
    mask = row != col                                    # remove_self_loops
    row = row[mask]
    col = col[mask]
    w = edge_weight[mask]
    deg = jnp.zeros((num_nodes,), jnp.float32).at[row].add(w)
    dinv = jnp.where(deg > 0, deg ** -0.5, 0.0)
    norm = -dinv[row] * w * dinv[col]
    L = jnp.zeros((num_nodes, num_nodes), jnp.float32).at[col, row].add(norm)
    return L


def pack_slab(lhat, pool, p):
    """Pack operators / parameters into one [SLAB_ROWS, 128] bf16 slab."""
    # fc1 -> fc2 -> fc3 has no activation between layers: collapse to one affine.
    wfc = p["fw1"] @ p["fw2"] @ p["fw3"]                          # [64, 5]
    bfc = (p["fb1"] @ p["fw2"] + p["fb2"]) @ p["fw3"] + p["fb3"]  # [1, 5]

    eye = jnp.eye(SAMPLES_PER_TILE, dtype=jnp.float32)
    l_blk = jnp.kron(eye, lhat)          # [128, 128] block-diag Laplacian
    pool_blk = jnp.kron(eye, pool)       # [32, 128]  block-diag pooling

    def blk(a, rows, fill=0.0):
        out = jnp.full((rows, LANES), fill, jnp.float32)
        return out.at[:a.shape[0], :a.shape[1]].set(a.astype(jnp.float32))

    sections = [
        blk(l_blk, 128),                 # R_LBLK
        blk(pool_blk, 32),               # R_POOL
        blk(p["w1a"], 80),               # R_W1A
        blk(p["w1b"], 80),               # R_W1B
        blk(p["b1"], 16),                # R_B1
        blk(p["w2a"], 128),              # R_W2A  (zero-padded K)
        blk(p["w2b"], 128),              # R_W2B
        blk(p["b2"], 16),                # R_B2
        blk(p["w3a"], 128),              # R_W3A
        blk(p["w3b"], 128),              # R_W3B
        blk(p["b3"], 16),                # R_B3
        blk(wfc, 128),                   # R_WFC
        blk(bfc, 16, fill=NEG_PAD),      # R_BFC (pad lanes -> -1e30)
    ]
    slab = jnp.concatenate(sections, axis=0).astype(jnp.bfloat16)
    assert slab.shape == (SLAB_ROWS, LANES)
    return slab


def net_kernel(x_ref, slab_ref, out_ref):
    f32, bf16 = jnp.float32, jnp.bfloat16
    Lb = slab_ref[R_LBLK:R_LBLK + TILE_NODES, :]          # [128,128] bf16
    x = x_ref[...]                                        # [128, 80] bf16

    def cheb_relu(h, wa_row, wb_row, k_rows, b_row):
        # ChebConv K=2:  T0 = h, T1 = L_hat @ h ;  out = relu(T0@W0 + T1@W1 + b)
        # (two sublane-aligned ref-view dots, no lane-axis concatenate)
        t1 = jnp.dot(Lb, h, preferred_element_type=f32).astype(bf16)
        wa = slab_ref[wa_row:wa_row + k_rows, :]          # [k_rows, 128] bf16
        wb = slab_ref[wb_row:wb_row + k_rows, :]
        acc = (jnp.dot(h, wa, preferred_element_type=f32)
               + jnp.dot(t1, wb, preferred_element_type=f32))
        b = slab_ref[b_row:b_row + 16, :][0:1, :].astype(f32)   # [1,128]
        return jnp.maximum(acc + b, 0.0).astype(bf16)

    h = cheb_relu(x, R_W1A, R_W1B, FEAT_IN, R_B1)   # [128,128], real cols 0:16
    h = cheb_relu(h, R_W2A, R_W2B, LANES, R_B2)     # real cols 0:32
    h = cheb_relu(h, R_W3A, R_W3B, LANES, R_B3)     # real cols 0:64

    # fc1->fc2->fc3 collapsed to one affine (no inter-fc activation; dropout is
    # identity at inference).  global_add_pool commuted after the linear fc:
    #   P @ (h @ W) == (P @ h) @ W
    wfc = slab_ref[R_WFC:R_WFC + LANES, :]                       # [128,128] bf16
    y = jnp.dot(h, wfc, preferred_element_type=f32)              # [128,128] f32
    pool = slab_ref[R_POOL:R_POOL + TILE_OUT, :].astype(f32)     # [32,128] (0/1)
    logits = jnp.dot(pool, y, preferred_element_type=f32)        # [32,128]
    logits = logits + slab_ref[R_BFC:R_BFC + 16, :][0:1, :].astype(f32)

    # log_softmax over the lane axis; padded lanes carry -1e30 -> exp() == 0.
    m = jnp.max(logits, axis=1, keepdims=True)
    z = logits - m
    lse = jnp.log(jnp.sum(jnp.exp(z), axis=1, keepdims=True))
    out_ref[...] = (z - lse).astype(out_ref.dtype)


def _pallas_forward(x_flat, slab, num_tiles):
    total_out = num_tiles * TILE_OUT
    flops = num_tiles * (2 * TILE_NODES * LANES * LANES * 8
                         + 2 * TILE_OUT * LANES * LANES)
    bytes_accessed = (x_flat.size * 2 + slab.size * 2 + total_out * LANES * 4)
    return pl.pallas_call(
        net_kernel,
        out_shape=jax.ShapeDtypeStruct((total_out, LANES), jnp.float32),
        grid=(num_tiles,),
        in_specs=[
            # per-tile x block, natural 80-lane width (no host lane padding)
            pl.BlockSpec((TILE_NODES, FEAT_IN), lambda i: (i, 0)),
            # constant index_map: slab DMA'd once, resident across all tiles
            pl.BlockSpec((SLAB_ROWS, LANES), lambda i: (0, 0)),
        ],
        out_specs=pl.BlockSpec((TILE_OUT, LANES), lambda i: (i, 0)),
        compiler_params=pltpu.CompilerParams(
            dimension_semantics=("parallel",)),
        cost_estimate=pl.CostEstimate(
            flops=flops,
            transcendentals=num_tiles * TILE_OUT * LANES,
            bytes_accessed=bytes_accessed),
    )(x_flat, slab)


@jax.jit
def net_forward(x_batched, slab):
    """x_batched: [num_samples, 8, 80] f32.  Returns [num_samples, 2, 5] log-probs."""
    n = x_batched.shape[0]
    n_pad = ((n + SAMPLES_PER_TILE - 1) // SAMPLES_PER_TILE) * SAMPLES_PER_TILE
    num_tiles = n_pad // SAMPLES_PER_TILE
    x_flat = jnp.zeros((n_pad * NUM_NODES, FEAT_IN), jnp.bfloat16)
    x_flat = x_flat.at[: n * NUM_NODES].set(
        x_batched.reshape(n * NUM_NODES, FEAT_IN).astype(jnp.bfloat16))
    out = _pallas_forward(x_flat, slab, num_tiles)
    out = out[: n * GRAPHS_PER_SAMPLE, :5]
    return out.reshape(n, GRAPHS_PER_SAMPLE, 5)


def net_reference(x, lhat, pool, p):
    """Pure-JAX f32 reference matching the PyTorch forward (eval mode), 1 sample."""
    def cheb(h, wa, wb, b):
        return jnp.maximum(h @ wa + (lhat @ h) @ wb + b, 0.0)
    h = cheb(x, p["w1a"], p["w1b"], p["b1"])
    h = cheb(h, p["w2a"], p["w2b"], p["b2"])
    h = cheb(h, p["w3a"], p["w3b"], p["b3"])
    g = pool @ h                                   # global_add_pool
    g = g @ p["fw1"] + p["fb1"]
    g = g @ p["fw2"] + p["fb2"]
    g = g @ p["fw3"] + p["fb3"]
    return jax.nn.log_softmax(g, axis=1)


def init_params(key):
    """Deterministic synthetic parameter init (shapes from Net.__init__)."""
    def dense(k, fan_in, fan_out):
        return (jax.random.normal(k, (fan_in, fan_out), jnp.float32)
                * (1.0 / np.sqrt(fan_in)))

    ks = jax.random.split(key, 12)
    p = {}
    # ChebConv(80, 16, K=2): two weight mats [80,16] + bias [16]
    p["w1a"] = dense(ks[0], 80, 16)
    p["w1b"] = dense(ks[1], 80, 16)
    p["b1"] = jnp.zeros((1, 16), jnp.float32) + 0.01
    # ChebConv(16, 32, K=2)
    p["w2a"] = dense(ks[2], 16, 32)
    p["w2b"] = dense(ks[3], 16, 32)
    p["b2"] = jnp.zeros((1, 32), jnp.float32) + 0.01
    # ChebConv(32, 64, K=2)
    p["w3a"] = dense(ks[4], 32, 64)
    p["w3b"] = dense(ks[5], 32, 64)
    p["b3"] = jnp.zeros((1, 64), jnp.float32) + 0.01
    # fc1: Linear(64, 100); fc2: Linear(100, 20); fc3: Linear(20, 5)
    p["fw1"] = dense(ks[6], 64, 100)
    p["fb1"] = jax.random.normal(ks[7], (1, 100), jnp.float32) * 0.01
    p["fw2"] = dense(ks[8], 100, 20)
    p["fb2"] = jax.random.normal(ks[9], (1, 20), jnp.float32) * 0.01
    p["fw3"] = dense(ks[10], 20, 5)
    p["fb3"] = jax.random.normal(ks[11], (1, 5), jnp.float32) * 0.01
    return p


if __name__ == "__main__":
    key = jax.random.PRNGKey(0)
    k_x, k_w, k_p = jax.random.split(key, 3)

    # Batch of 32 independent `data` objects (2 grid tiles of 16 samples each),
    # all sharing the fixed 8-node topology / edge weights / batch assignment.
    NUM_SAMPLES = 32
    x_batched = jax.random.normal(
        k_x, (NUM_SAMPLES, NUM_NODES, FEAT_IN), jnp.float32)
    edge_weight = jax.random.uniform(k_w, (EDGE_INDEX.shape[1],), jnp.float32,
                                     minval=0.1, maxval=1.0)

    # data.batch: 2 graphs of 4 nodes each; batch_size = len(data.y) = 2
    batch = jnp.array([0, 0, 0, 0, 1, 1, 1, 1], dtype=jnp.int32)
    pool = (jnp.arange(GRAPHS_PER_SAMPLE)[:, None]
            == batch[None, :]).astype(jnp.float32)

    lhat = build_scaled_laplacian(jnp.asarray(EDGE_INDEX), edge_weight, NUM_NODES)
    params = init_params(k_p)
    slab = pack_slab(lhat, pool, params)

    out = net_forward(x_batched, slab)
    out = jax.block_until_ready(out)

    ref = jax.vmap(lambda xi: net_reference(xi, lhat, pool, params))(x_batched)

    assert out.shape == (NUM_SAMPLES, GRAPHS_PER_SAMPLE, 5)
    assert bool(jnp.all(jnp.isfinite(out)))
    # bf16 matmul inputs (f32 accumulation) vs the pure-f32 reference.
    assert bool(jnp.allclose(out, ref, atol=1e-1, rtol=1e-1)), (
        "kernel/reference mismatch",
        float(jnp.max(jnp.abs(out - ref))),
        np.asarray(out[0]), np.asarray(ref[0]))
    print("KERNEL_OK")
</pallas_src>

<mosaic_0001>
module attributes {stable_mosaic.version = 11 : i64} {
  func.func @net_kernel(%arg0: i32, %arg1: memref<128x80xbf16, #tpu.memory_space<vmem>>, %arg2: memref<1024x128xbf16, #tpu.memory_space<vmem>>, %arg3: memref<32x128xf32, #tpu.memory_space<vmem>>) attributes {dimension_semantics = [#tpu.dimension_semantics<parallel>], iteration_bounds = array<i64: 2>, scalar_prefetch = 0 : i64, scratch_operands = 0 : i64, tpu.core_type = #tpu.core_type<tc>, window_params = [{transform_indices = @transform_0, window_bounds = array<i64: 128, 80>}, {pipeline_mode = #tpu.pipeline_mode<synchronous>, transform_indices = @transform_1, window_bounds = array<i64: 1024, 128>}, {transform_indices = @transform_2, window_bounds = array<i64: 32, 128>}]} {
    %c0 = arith.constant 0 : index
    %c0_0 = arith.constant 0 : index
    %0 = vector.load %arg2[%c0, %c0_0] : memref<1024x128xbf16, #tpu.memory_space<vmem>>, vector<128x128xbf16>
    %c0_1 = arith.constant 0 : index
    %c0_2 = arith.constant 0 : index
    %1 = vector.load %arg1[%c0_1, %c0_2] : memref<128x80xbf16, #tpu.memory_space<vmem>>, vector<128x80xbf16>
    %cst = arith.constant dense<0.000000e+00> : vector<128x80xf32>
    %2 = tpu.matmul %0, %1, %cst {dimension_numbers = #tpu.dot_dimension_numbers<[1], [0], [0], [1], [0, 0, 1, 1], [], []>} : vector<128x128xbf16>, vector<128x80xbf16>, vector<128x80xf32> -> vector<128x80xf32>
    %3 = arith.truncf %2 : vector<128x80xf32> to vector<128x80xbf16>
    %c160 = arith.constant 160 : index
    %c0_3 = arith.constant 0 : index
    %4 = vector.load %arg2[%c160, %c0_3] : memref<1024x128xbf16, #tpu.memory_space<vmem>>, vector<80x128xbf16>
    %c240 = arith.constant 240 : index
    %c0_4 = arith.constant 0 : index
    %5 = vector.load %arg2[%c240, %c0_4] : memref<1024x128xbf16, #tpu.memory_space<vmem>>, vector<80x128xbf16>
    %cst_5 = arith.constant dense<0.000000e+00> : vector<128x128xf32>
    %6 = tpu.matmul %1, %4, %cst_5 {dimension_numbers = #tpu.dot_dimension_numbers<[1], [0], [0], [1], [0, 0, 1, 1], [], []>} : vector<128x80xbf16>, vector<80x128xbf16>, vector<128x128xf32> -> vector<128x128xf32>
    %cst_6 = arith.constant dense<0.000000e+00> : vector<128x128xf32>
    %7 = tpu.matmul %3, %5, %cst_6 {dimension_numbers = #tpu.dot_dimension_numbers<[1], [0], [0], [1], [0, 0, 1, 1], [], []>} : vector<128x80xbf16>, vector<80x128xbf16>, vector<128x128xf32> -> vector<128x128xf32>
    %8 = arith.addf %6, %7 : vector<128x128xf32>
    %c320 = arith.constant 320 : index
    %c0_7 = arith.constant 0 : index
    %9 = vector.load %arg2[%c320, %c0_7] : memref<1024x128xbf16, #tpu.memory_space<vmem>>, vector<16x128xbf16>
    %10 = vector.extract_strided_slice %9 {offsets = [0, 0], sizes = [1, 128], strides = [1, 1]} : vector<16x128xbf16> to vector<1x128xbf16>
    %11 = arith.extf %10 : vector<1x128xbf16> to vector<1x128xf32>
    %12 = vector.broadcast %11 : vector<1x128xf32> to vector<128x128xf32>
    %13 = arith.addf %8, %12 : vector<128x128xf32>
    %cst_8 = arith.constant 0.000000e+00 : f32
    %14 = vector.broadcast %cst_8 : f32 to vector<128x128xf32>
    %15 = arith.maximumf %13, %14 : vector<128x128xf32>
    %16 = arith.truncf %15 : vector<128x128xf32> to vector<128x128xbf16>
    %cst_9 = arith.constant dense<0.000000e+00> : vector<128x128xf32>
    %17 = tpu.matmul %0, %16, %cst_9 {dimension_numbers = #tpu.dot_dimension_numbers<[1], [0], [0], [1], [0, 0, 1, 1], [], []>} : vector<128x128xbf16>, vector<128x128xbf16>, vector<128x128xf32> -> vector<128x128xf32>
    %18 = arith.truncf %17 : vector<128x128xf32> to vector<128x128xbf16>
    %c336 = arith.constant 336 : index
    %c0_10 = arith.constant 0 : index
    %19 = vector.load %arg2[%c336, %c0_10] : memref<1024x128xbf16, #tpu.memory_space<vmem>>, vector<128x128xbf16>
    %c464 = arith.constant 464 : index
    %c0_11 = arith.constant 0 : index
    %20 = vector.load %arg2[%c464, %c0_11] : memref<1024x128xbf16, #tpu.memory_space<vmem>>, vector<128x128xbf16>
    %cst_12 = arith.constant dense<0.000000e+00> : vector<128x128xf32>
    %21 = tpu.matmul %16, %19, %cst_12 {dimension_numbers = #tpu.dot_dimension_numbers<[1], [0], [0], [1], [0, 0, 1, 1], [], []>} : vector<128x128xbf16>, vector<128x128xbf16>, vector<128x128xf32> -> vector<128x128xf32>
    %cst_13 = arith.constant dense<0.000000e+00> : vector<128x128xf32>
    %22 = tpu.matmul %18, %20, %cst_13 {dimension_numbers = #tpu.dot_dimension_numbers<[1], [0], [0], [1], [0, 0, 1, 1], [], []>} : vector<128x128xbf16>, vector<128x128xbf16>, vector<128x128xf32> -> vector<128x128xf32>
    %23 = arith.addf %21, %22 : vector<128x128xf32>
    %c592 = arith.constant 592 : index
    %c0_14 = arith.constant 0 : index
    %24 = vector.load %arg2[%c592, %c0_14] : memref<1024x128xbf16, #tpu.memory_space<vmem>>, vector<16x128xbf16>
    %25 = vector.extract_strided_slice %24 {offsets = [0, 0], sizes = [1, 128], strides = [1, 1]} : vector<16x128xbf16> to vector<1x128xbf16>
    %26 = arith.extf %25 : vector<1x128xbf16> to vector<1x128xf32>
    %27 = vector.broadcast %26 : vector<1x128xf32> to vector<128x128xf32>
    %28 = arith.addf %23, %27 : vector<128x128xf32>
    %cst_15 = arith.constant 0.000000e+00 : f32
    %29 = vector.broadcast %cst_15 : f32 to vector<128x128xf32>
    %30 = arith.maximumf %28, %29 : vector<128x128xf32>
    %31 = arith.truncf %30 : vector<128x128xf32> to vector<128x128xbf16>
    %cst_16 = arith.constant dense<0.000000e+00> : vector<128x128xf32>
    %32 = tpu.matmul %0, %31, %cst_16 {dimension_numbers = #tpu.dot_dimension_numbers<[1], [0], [0], [1], [0, 0, 1, 1], [], []>} : vector<128x128xbf16>, vector<128x128xbf16>, vector<128x128xf32> -> vector<128x128xf32>
    %33 = arith.truncf %32 : vector<128x128xf32> to vector<128x128xbf16>
    %c608 = arith.constant 608 : index
    %c0_17 = arith.constant 0 : index
    %34 = vector.load %arg2[%c608, %c0_17] : memref<1024x128xbf16, #tpu.memory_space<vmem>>, vector<128x128xbf16>
    %c736 = arith.constant 736 : index
    %c0_18 = arith.constant 0 : index
    %35 = vector.load %arg2[%c736, %c0_18] : memref<1024x128xbf16, #tpu.memory_space<vmem>>, vector<128x128xbf16>
    %cst_19 = arith.constant dense<0.000000e+00> : vector<128x128xf32>
    %36 = tpu.matmul %31, %34, %cst_19 {dimension_numbers = #tpu.dot_dimension_numbers<[1], [0], [0], [1], [0, 0, 1, 1], [], []>} : vector<128x128xbf16>, vector<128x128xbf16>, vector<128x128xf32> -> vector<128x128xf32>
    %cst_20 = arith.constant dense<0.000000e+00> : vector<128x128xf32>
    %37 = tpu.matmul %33, %35, %cst_20 {dimension_numbers = #tpu.dot_dimension_numbers<[1], [0], [0], [1], [0, 0, 1, 1], [], []>} : vector<128x128xbf16>, vector<128x128xbf16>, vector<128x128xf32> -> vector<128x128xf32>
    %38 = arith.addf %36, %37 : vector<128x128xf32>
    %c864 = arith.constant 864 : index
    %c0_21 = arith.constant 0 : index
    %39 = vector.load %arg2[%c864, %c0_21] : memref<1024x128xbf16, #tpu.memory_space<vmem>>, vector<16x128xbf16>
    %40 = vector.extract_strided_slice %39 {offsets = [0, 0], sizes = [1, 128], strides = [1, 1]} : vector<16x128xbf16> to vector<1x128xbf16>
    %41 = arith.extf %40 : vector<1x128xbf16> to vector<1x128xf32>
    %42 = vector.broadcast %41 : vector<1x128xf32> to vector<128x128xf32>
    %43 = arith.addf %38, %42 : vector<128x128xf32>
    %cst_22 = arith.constant 0.000000e+00 : f32
    %44 = vector.broadcast %cst_22 : f32 to vector<128x128xf32>
    %45 = arith.maximumf %43, %44 : vector<128x128xf32>
    %46 = arith.truncf %45 : vector<128x128xf32> to vector<128x128xbf16>
    %c880 = arith.constant 880 : index
    %c0_23 = arith.constant 0 : index
    %47 = vector.load %arg2[%c880, %c0_23] : memref<1024x128xbf16, #tpu.memory_space<vmem>>, vector<128x128xbf16>
    %cst_24 = arith.constant dense<0.000000e+00> : vector<128x128xf32>
    %48 = tpu.matmul %46, %47, %cst_24 {dimension_numbers = #tpu.dot_dimension_numbers<[1], [0], [0], [1], [0, 0, 1, 1], [], []>} : vector<128x128xbf16>, vector<128x128xbf16>, vector<128x128xf32> -> vector<128x128xf32>
    %c128 = arith.constant 128 : index
    %c0_25 = arith.constant 0 : index
    %49 = vector.load %arg2[%c128, %c0_25] : memref<1024x128xbf16, #tpu.memory_space<vmem>>, vector<32x128xbf16>
    %50 = arith.extf %49 : vector<32x128xbf16> to vector<32x128xf32>
    %cst_26 = arith.constant dense<0.000000e+00> : vector<32x128xf32>
    %51 = tpu.matmul %50, %48, %cst_26 {dimension_numbers = #tpu.dot_dimension_numbers<[1], [0], [0], [1], [0, 0, 1, 1], [], []>} : vector<32x128xf32>, vector<128x128xf32>, vector<32x128xf32> -> vector<32x128xf32>
    %c1008 = arith.constant 1008 : index
    %c0_27 = arith.constant 0 : index
    %52 = vector.load %arg2[%c1008, %c0_27] : memref<1024x128xbf16, #tpu.memory_space<vmem>>, vector<16x128xbf16>
    %53 = vector.extract_strided_slice %52 {offsets = [0, 0], sizes = [1, 128], strides = [1, 1]} : vector<16x128xbf16> to vector<1x128xbf16>
    %54 = arith.extf %53 : vector<1x128xbf16> to vector<1x128xf32>
    %55 = vector.broadcast %54 : vector<1x128xf32> to vector<32x128xf32>
    %56 = arith.addf %51, %55 : vector<32x128xf32>
    %cst_28 = arith.constant dense<0xFF800000> : vector<32xf32>
    %57 = vector.multi_reduction <maximumf>, %56, %cst_28 [1] : vector<32x128xf32> to vector<32xf32>
    %58 = vector.shape_cast %57 : vector<32xf32> to vector<32x1xf32>
    %59 = vector.broadcast %58 : vector<32x1xf32> to vector<32x128xf32>
    %60 = arith.subf %56, %59 : vector<32x128xf32>
    %61 = math.exp %60 : vector<32x128xf32>
    %cst_29 = arith.constant dense<0.000000e+00> : vector<32xf32>
    %62 = vector.multi_reduction <add>, %61, %cst_29 [1] : vector<32x128xf32> to vector<32xf32>
    %63 = vector.shape_cast %62 : vector<32xf32> to vector<32x1xf32>
    %64 = math.log %63 : vector<32x1xf32>
    %65 = vector.broadcast %64 : vector<32x1xf32> to vector<32x128xf32>
    %66 = arith.subf %60, %65 : vector<32x128xf32>
    %c0_30 = arith.constant 0 : index
    %c0_31 = arith.constant 0 : index
    %67 = vector.load %arg3[%c0_30, %c0_31] : memref<32x128xf32, #tpu.memory_space<vmem>>, vector<32x128xf32>
    tpu.vector_store %arg3[%c0_30, %c0_31], %66 {strides = array<i32>} : memref<32x128xf32, #tpu.memory_space<vmem>>, vector<32x128xf32>,
    return
  }
  func.func @transform_0(%arg0: i32) -> (i32, i32) {
    %c0_i32 = arith.constant 0 : i32
    %c0_i32_0 = arith.constant 0 : i32
    return %arg0, %c0_i32 : i32, i32
  }
  func.func @transform_1(%arg0: i32) -> (i32, i32) {
    %c0_i32 = arith.constant 0 : i32
    %c0_i32_0 = arith.constant 0 : i32
    %c0_i32_1 = arith.constant 0 : i32
    return %c0_i32, %c0_i32_0 : i32, i32
  }
  func.func @transform_2(%arg0: i32) -> (i32, i32) {
    %c0_i32 = arith.constant 0 : i32
    %c0_i32_0 = arith.constant 0 : i32
    return %arg0, %c0_i32 : i32, i32
  }
}

</mosaic_0001>

<llo_original>
// kernel: net_forward.1
$region0: #{net_forward.1}
  #allocation0 [shape = 'u32[]', space=smem, size = 0x4, offset = 0x4, fixed_abs, tag = 'smem constant byte address 0x4 - core index']
  #allocation1 [shape = 'u32[144,128]{1,0:T(1,128)}', space=vmem, size = 0x12000, scoped, tag = 'internal scratch']
  %s0 = inlined_call_operand.vmem [shape: bf16[256,80], index: 0, kind: input, shape index: {}]
  %s1 = inlined_call_operand.hbm [shape: bf16[1024,128], index: 1, kind: input, shape index: {}]
  %s2 = inlined_call_operand.vmem [shape: f32[64,128], index: 2, kind: output, shape index: {}]
  %s3 = sld [smem:[#allocation0]]
  $region45: #{net_forward.1} parent=0
    _
  %s5 = ssub.s32 1, %s3
  %s6 = scalar_select 0, %s5, %s3
  $region1: #{net_forward.1} parent=0
    #allocation2 [shape = 'u8[262144]{0}', space=vmem, size = 0x40000, scoped, tag = 'input window, operand 1, single buffered']
    #allocation3 [shape = 's32[2]{0}', space=sflag, size = 0x8, scoped, tag = 'scoped memory for net_forward.1']
    %7 = vsyncpa [#allocation3], 0
    loop: start=0, step=1, limit=4
    $region2: #{net_forward.1} parent=1 // loop_pre_header
      _
    $region3: #{net_forward.1} parent=1 // loop_header
      %s9 = sphi 0, %s13
      %p10 = scmp.ge.s32.totalorder %s9, 4
      %s19 = sphi 0, %s21
      %s22 = sphi 0, %s19
      %s23 = sphi 0, %s22
      %s39 = sphi 0, %s23
      %s43 = sphi 0, %s43
      %s45 = sphi 0, %s43
      %s46 = sphi 0, %s45
      %s60 = sphi 0, %s46
      %s66 = sphi 0, %s68
      %s69 = sphi 0, %s66
      %s70 = sphi 0, %s69
      %s86 = sphi 0, %s70
    $region4: #{net_forward.1} parent=1 // loop_header_branch
      %12 = sbr.rel (%p10) target = $region8
    $region5: #{net_forward.1} parent=1 // loop_body
      %s14 = ssub.s32 %s9, 1
      %s15 = ssub.s32 %s9, 2
      %s16 = sadd.s32 %s9, 1
      %s17 = ssub.s32 %s9, %s16
      %p18 = scmp.eq.s32.totalorder %s17, 0
      %s20 = sadd.s32 %s19, 1
      %s21 = scalar_select %p18, %s19, %s20
      %p24 = pneg %p18
      %p25 = scmp.eq.s32.totalorder %s9, 1
      %p26 = por %p24, %p25
      %p27 = scmp.ne.s32.totalorder %s19, %s22
      %p28 = scmp.eq.s32.totalorder %s9, 0
      %p29 = por %p27, %p28
      %p30 = scmp.ne.s32.totalorder %s19, %s22
      %p31 = scmp.eq.s32.totalorder %s14, 1
      %p32 = por %p30, %p31
      %p33 = scmp.ne.s32.totalorder %s22, %s23
      %p34 = scmp.eq.s32.totalorder %s14, 0
      %p35 = por %p33, %p34
      %p36 = scmp.ne.s32.totalorder %s22, %s23
      %p37 = scmp.eq.s32.totalorder %s15, 1
      %p38 = por %p36, %p37
      %p40 = scmp.ne.s32.totalorder %s23, %s39
      %p41 = scmp.eq.s32.totalorder %s15, 0
      %p42 = por %p40, %p41
      %s44 = sadd.s32 %s43, 1
      %p47 = scmp.eq.s32.totalorder %s9, 1
      %p48 = scmp.ne.s32.totalorder %s43, %s45
      %p49 = scmp.eq.s32.totalorder %s9, 0
      %p50 = por %p48, %p49
      %p51 = scmp.ne.s32.totalorder %s43, %s45
      %p52 = scmp.eq.s32.totalorder %s14, 1
      %p53 = por %p51, %p52
      %p54 = scmp.ne.s32.totalorder %s45, %s46
      %p55 = scmp.eq.s32.totalorder %s14, 0
      %p56 = por %p54, %p55
      %p57 = scmp.ne.s32.totalorder %s45, %s46
      %p58 = scmp.eq.s32.totalorder %s15, 1
      %p59 = por %p57, %p58
      %p61 = scmp.ne.s32.totalorder %s46, %s60
      %p62 = scmp.eq.s32.totalorder %s15, 0
      %p63 = por %p61, %p62
      %s64 = ssub.s32 %s9, %s16
      %p65 = scmp.eq.s32.totalorder %s64, 0
      %s67 = sadd.s32 %s66, 1
      %s68 = scalar_select %p65, %s66, %s67
      %p71 = pneg %p65
      %p72 = scmp.eq.s32.totalorder %s9, 1
      %p73 = por %p71, %p72
      %p74 = scmp.ne.s32.totalorder %s66, %s69
      %p75 = scmp.eq.s32.totalorder %s9, 0
      %p76 = por %p74, %p75
      %p77 = scmp.ne.s32.totalorder %s66, %s69
      %p78 = scmp.eq.s32.totalorder %s14, 1
      %p79 = por %p77, %p78
      %p80 = scmp.ne.s32.totalorder %s69, %s70
      %p81 = scmp.eq.s32.totalorder %s14, 0
      %p82 = por %p80, %p81
      %p83 = scmp.ne.s32.totalorder %s69, %s70
      %p84 = scmp.eq.s32.totalorder %s15, 1
      %p85 = por %p83, %p84
      %p87 = scmp.ne.s32.totalorder %s70, %s86
      %p88 = scmp.eq.s32.totalorder %s15, 0
      %p89 = por %p87, %p88
      %p90 = scmp.le.s32.totalorder 1, %s9
      %p91 = scmp.lt.s32.totalorder %s9, 3
      %p92 = pnand %p90, %p91
      %p93 = pneg %p92
      // Predicated region
      $region9: #{net_forward.1} parent=5 // pred_check
        _
      $region10: #{net_forward.1} parent=5 // pred_check_branch
        %95 = sbr.rel (%p92) target = $region12
      $region11: #{net_forward.1} parent=5 // pred_region
        %s96 = ssub.s32 %s9, 1
        // Predicated region
        $region13: #{net_forward.1} parent=11 // pred_check
          %p97 = pneg %p56
        $region14: #{net_forward.1} parent=11 // pred_check_branch
          %99 = sbr.rel (%p97) target = $region16
        $region15: #{net_forward.1} parent=11 // pred_region
          %s101 = ssub.s32 8192, 8192
          %102 = vsyncadd [#allocation3], %s101
          %s103 = sshll.u32 [#allocation2], 4
          %s104 = int_to_ptr.vmem [resolvable:$true] %s103
          %109 = dma.hbm_to_vmem [thread:$0]  %s1, 8192, %s104, [#allocation3], 64, 64, 4
        $region16: #{net_forward.1} parent=11 // pred_fallthru
          _
      $region12: #{net_forward.1} parent=5 // pred_fallthru
        _
      %p110 = scmp.lt.s32.totalorder %s9, 2
      // Predicated region
      $region17: #{net_forward.1} parent=5 // pred_check
        %p111 = pneg %p110
      $region18: #{net_forward.1} parent=5 // pred_check_branch
        %113 = sbr.rel (%p111) target = $region20
      $region19: #{net_forward.1} parent=5 // pred_region
        // Predicated region
        $region21: #{net_forward.1} parent=19 // pred_check
          %p114 = pneg %p29
        $region22: #{net_forward.1} parent=19 // pred_check_branch
          %116 = sbr.rel (%p114) target = $region24
        $region23: #{net_forward.1} parent=19 // pred_region
          %s117 = smul.u32 16, %s9
          %p118 = scmp.lt.s32.totalorder %s117, 31
          %s119 = scalar_select %p118, %s117, 31
          %s120 = smul.addr %s119, 4
          %s121 = scalar_lea.vmem %s0, %s120
          %s122 = smul.u32 16, %s9
        $region24: #{net_forward.1} parent=19 // pred_fallthru
          _
      $region20: #{net_forward.1} parent=5 // pred_fallthru
        _
      %p123 = scmp.le.s32.totalorder 1, %s9
      %p124 = scmp.lt.s32.totalorder %s9, 3
      %p125 = pnand %p123, %p124
      %p126 = pneg %p125
      // Predicated region
      $region25: #{net_forward.1} parent=5 // pred_check
        _
      $region26: #{net_forward.1} parent=5 // pred_check_branch
        %128 = sbr.rel (%p125) target = $region28
      $region27: #{net_forward.1} parent=5 // pred_region
        %s129 = ssub.s32 %s9, 1
        // Predicated region
        $region29: #{net_forward.1} parent=27 // pred_check
          %p130 = pneg %p56
        $region30: #{net_forward.1} parent=27 // pred_check_branch
          %132 = sbr.rel (%p130) target = $region32
        $region31: #{net_forward.1} parent=27 // pred_region
          %133 = dma.done [#allocation3], 8192
        $region32: #{net_forward.1} parent=27 // pred_fallthru
          _
        %s134 = smul.u32 16, %s14
        %p135 = scmp.lt.s32.totalorder %s134, 31
        %s136 = scalar_select %p135, %s134, 31
        %s137 = smul.addr %s136, 4
        %s138 = scalar_lea.vmem %s0, %s137
        %p139 = pneg %p35
        %p140 = pneg %p32
        %p141 = pneg %p56
        %p142 = pneg %p53
        %p143 = pneg %p82
        %p144 = pneg %p79
        %s145 = smul.u32 4, %s14
        %p146 = scmp.lt.s32.totalorder %s145, 7
        %s147 = scalar_select %p146, %s145, 7
        %s148 = smul.addr %s147, 8
        %s149 = scalar_lea.vmem %s2, %s148
        %s150 = smul.u32 16, %s14
        %p151 = scmp.lt.s32.totalorder %s150, 31
        %s152 = scalar_select %p151, %s150, 31
        %s153 = smul.addr %s152, 4
        %s154 = scalar_lea.vmem %s0, %s153
        %s155 = smul.u32 16, %s14
        %s156 = smul.u32 4, %s14
        %p157 = scmp.lt.s32.totalorder %s156, 7
        %s158 = scalar_select %p157, %s156, 7
        %s159 = smul.addr %s158, 8
        %s160 = scalar_lea.vmem %s2, %s159
        %s161 = smul.u32 4, %s14
        %v163 = vld [vmem:[#allocation2] sm:$0xf]
        %v164 = vld [vmem:[#allocation2 + $0x4] sm:$0xf]
        %v165 = vld [vmem:[#allocation2 + $0x8] sm:$0xf]
        %v166 = vld [vmem:[#allocation2 + $0xc] sm:$0xf]
        %v167 = vld [vmem:[#allocation2 + $0x10] sm:$0xf]
        %v168 = vld [vmem:[#allocation2 + $0x14] sm:$0xf]
        %v169 = vld [vmem:[#allocation2 + $0x18] sm:$0xf]
        %v170 = vld [vmem:[#allocation2 + $0x1c] sm:$0xf]
        %v171 = vld [vmem:[#allocation2 + $0x20] sm:$0xf]
        %v172 = vld [vmem:[#allocation2 + $0x24] sm:$0xf]
        %v173 = vld [vmem:[#allocation2 + $0x28] sm:$0xf]
        %v174 = vld [vmem:[#allocation2 + $0x2c] sm:$0xf]
        %v175 = vld [vmem:[#allocation2 + $0x30] sm:$0xf]
        %v176 = vld [vmem:[#allocation2 + $0x34] sm:$0xf]
        %v177 = vld [vmem:[#allocation2 + $0x38] sm:$0xf]
        %v178 = vld [vmem:[#allocation2 + $0x3c] sm:$0xf]
        %v179 = vld [vmem:[%s154] sm:$0xf]
        %v180 = vld [vmem:[%s154 + $0x4] sm:$0xf]
        %v181 = vld [vmem:[%s154 + $0x8] sm:$0xf]
        %v182 = vld [vmem:[%s154 + $0xc] sm:$0xf]
        %v183 = vld [vmem:[%s154 + $0x10] sm:$0xf]
        %v184 = vld [vmem:[%s154 + $0x14] sm:$0xf]
        %v185 = vld [vmem:[%s154 + $0x18] sm:$0xf]
        %v186 = vld [vmem:[%s154 + $0x1c] sm:$0xf]
        %v187 = vld [vmem:[%s154 + $0x20] sm:$0xf]
        %v188 = vld [vmem:[%s154 + $0x24] sm:$0xf]
        %v189 = vld [vmem:[%s154 + $0x28] sm:$0xf]
        %v190 = vld [vmem:[%s154 + $0x2c] sm:$0xf]
        %v191 = vld [vmem:[%s154 + $0x30] sm:$0xf]
        %v192 = vld [vmem:[%s154 + $0x34] sm:$0xf]
        %v193 = vld [vmem:[%s154 + $0x38] sm:$0xf]
        %v194 = vld [vmem:[%s154 + $0x3c] sm:$0xf]
        %v211 = vunpack.c.l.b16 %v163
        %v212 = vunpack.c.l.b16 %v164
        %v213 = vunpack.c.l.b16 %v165
        %v214 = vunpack.c.l.b16 %v166
        %v215 = vunpack.c.l.b16 %v167
        %v216 = vunpack.c.l.b16 %v168
        %v217 = vunpack.c.l.b16 %v169
        %v218 = vunpack.c.l.b16 %v170
        %v219 = vunpack.c.l.b16 %v171
        %v220 = vunpack.c.l.b16 %v172
        %v221 = vunpack.c.l.b16 %v173
        %v222 = vunpack.c.l.b16 %v174
        %v223 = vunpack.c.l.b16 %v175
        %v224 = vunpack.c.l.b16 %v176
        %v225 = vunpack.c.l.b16 %v177
        %v226 = vunpack.c.l.b16 %v178
        %v227 = vpack.c.b16 %v212, %v211
        %v228 = vpack.c.b16 %v214, %v213
        %v229 = vpack.c.b16 %v216, %v215
        %v230 = vpack.c.b16 %v218, %v217
        %v231 = vpack.c.b16 %v220, %v219
        %v232 = vpack.c.b16 %v222, %v221
        %v233 = vpack.c.b16 %v224, %v223
        %v234 = vpack.c.b16 %v226, %v225
        %v259 = vunpack.c.l.b16 %v179
        %v260 = vunpack.c.l.b16 %v180
        %v261 = vunpack.c.l.b16 %v181
        %v262 = vunpack.c.l.b16 %v182
        %v263 = vunpack.c.l.b16 %v183
        %v264 = vunpack.c.l.b16 %v184
        %v265 = vunpack.c.l.b16 %v185
        %v266 = vunpack.c.l.b16 %v186
        %v267 = vunpack.c.l.b16 %v187
        %v268 = vunpack.c.l.b16 %v188
        %v269 = vunpack.c.l.b16 %v189
        %v270 = vunpack.c.l.b16 %v190
        %v271 = vunpack.c.l.b16 %v191
        %v272 = vunpack.c.l.b16 %v192
        %v273 = vunpack.c.l.b16 %v193
        %v274 = vunpack.c.l.b16 %v194
        %v275 = vpack.c.b16 %v260, %v259
        %v276 = vpack.c.b16 %v262, %v261
        %v277 = vpack.c.b16 %v264, %v263
        %v278 = vpack.c.b16 %v266, %v265
        %v279 = vpack.c.b16 %v268, %v267
        %v280 = vpack.c.b16 %v270, %v269
        %v281 = vpack.c.b16 %v272, %v271
        %v282 = vpack.c.b16 %v274, %v273
        %291 = vmatprep.subr.bf16.mxu0 0
        %292 = vmatpush1.bf16.msra.mxu0 %v282
        %293 = vmatprep.subr.bf16.mxu0 0
        %294 = vmatpush1.bf16.msra.mxu0 %v281
        %295 = vmatprep.subr.bf16.mxu0 0
        %296 = vmatpush1.bf16.msra.mxu0 %v280
        %297 = vmatprep.subr.bf16.mxu0 0
        %298 = vmatpush1.bf16.msra.mxu0 %v279
        %299 = vmatprep.subr.bf16.mxu0 0
        %300 = vmatpush1.bf16.msra.mxu0 %v278
        %301 = vmatprep.subr.bf16.mxu0 0
        %302 = vmatpush1.bf16.msra.mxu0 %v277
        %303 = vmatprep.subr.bf16.mxu0 0
        %304 = vmatpush1.bf16.msra.mxu0 %v276
        %305 = vmatprep.subr.bf16.mxu0 0
        %306 = vmatpush1.bf16.msra.mxu0 %v275
        %307 = vmatprep.subr.bf16.mxu0 0
        %308 = vmatpush2.bf16.msra.mxu0 0
        %309 = vmatprep.subr.bf16.mxu0 0
        %310 = vmatpush2.bf16.msra.mxu0 0
        %311 = vmatprep.subr.bf16.mxu0 0
        %312 = vmatpush2.bf16.msra.mxu0 0
        %313 = vmatprep.subr.bf16.mxu0 0
        %314 = vmatpush2.bf16.msra.mxu0 0
        %315 = vmatprep.subr.bf16.mxu0 0
        %316 = vmatpush2.bf16.msra.mxu0 0
        %317 = vmatprep.subr.bf16.mxu0 0
        %318 = vmatpush2.bf16.msra.mxu0 0
        %319 = vmatprep.subr.bf16.mxu0 0
        %320 = vmatpush2.bf16.msra.mxu0 0
        %321 = vmatprep.subr.bf16.mxu0 0
        %322 = vmatpush2.bf16.msra.mxu0 0
        %323 = vmatprep.mubr.bf16.mxu0 0
        %324 = vmatmul.mubr.bf16.gmra.mxu0 %v227
        %v325 = vpop.f32.mrf.mxu0
        %v326 = vadd.f32 0.0, %v325
        %v327 = vpop.f32.mrf.mxu0
        %v328 = vpop.f32.mrf.mxu0
        %v329 = vadd.f32 0.0, %v328
        %v330 = vpop.f32.mrf.mxu0
        %331 = vmatprep.mubr.bf16.mxu0 0
        %332 = vmatmul.mubr.bf16.gmra.mxu0 %v228
        %v333 = vpop.f32.mrf.mxu0
        %v334 = vadd.f32 0.0, %v333
        %v335 = vpop.f32.mrf.mxu0
        %v336 = vpop.f32.mrf.mxu0
        %v337 = vadd.f32 0.0, %v336
        %v338 = vpop.f32.mrf.mxu0
        %339 = vmatprep.mubr.bf16.mxu0 0
        %340 = vmatmul.mubr.bf16.gmra.mxu0 %v229
        %v341 = vpop.f32.mrf.mxu0
        %v342 = vadd.f32 0.0, %v341
        %v343 = vpop.f32.mrf.mxu0
        %v344 = vpop.f32.mrf.mxu0
        %v345 = vadd.f32 0.0, %v344
        %v346 = vpop.f32.mrf.mxu0
        %347 = vmatprep.mubr.bf16.mxu0 0
        %348 = vmatmul.mubr.bf16.gmra.mxu0 %v230
        %v349 = vpop.f32.mrf.mxu0
        %v350 = vadd.f32 0.0, %v349
        %v351 = vpop.f32.mrf.mxu0
        %v352 = vpop.f32.mrf.mxu0
        %v353 = vadd.f32 0.0, %v352
        %v354 = vpop.f32.mrf.mxu0
        %355 = vmatprep.mubr.bf16.mxu0 0
        %356 = vmatmul.mubr.bf16.gmra.mxu0 %v231
        %v357 = vpop.f32.mrf.mxu0
        %v358 = vadd.f32 0.0, %v357
        %v359 = vpop.f32.mrf.mxu0
        %v360 = vpop.f32.mrf.mxu0
        %v361 = vadd.f32 0.0, %v360
        %v362 = vpop.f32.mrf.mxu0
        %363 = vmatprep.mubr.bf16.mxu0 0
        %364 = vmatmul.mubr.bf16.gmra.mxu0 %v232
        %v365 = vpop.f32.mrf.mxu0
        %v366 = vadd.f32 0.0, %v365
        %v367 = vpop.f32.mrf.mxu0
        %v368 = vpop.f32.mrf.mxu0
        %v369 = vadd.f32 0.0, %v368
        %v370 = vpop.f32.mrf.mxu0
        %371 = vmatprep.mubr.bf16.mxu0 0
        %372 = vmatmul.mubr.bf16.gmra.mxu0 %v233
        %v373 = vpop.f32.mrf.mxu0
        %v374 = vadd.f32 0.0, %v373
        %v375 = vpop.f32.mrf.mxu0
        %v376 = vpop.f32.mrf.mxu0
        %v377 = vadd.f32 0.0, %v376
        %v378 = vpop.f32.mrf.mxu0
        %379 = vmatprep.mubr.bf16.mxu0 0
        %380 = vmatmul.mubr.bf16.gmra.mxu0 %v234
        %v381 = vpop.f32.mrf.mxu0
        %v382 = vadd.f32 0.0, %v381
        %v383 = vpop.f32.mrf.mxu0
        %v384 = vpop.f32.mrf.mxu0
        %v385 = vadd.f32 0.0, %v384
        %v386 = vpop.f32.mrf.mxu0
        %387 = vdwg.mxu0
        %v388 = vpack.c.bf16 %v329, %v326
        %v389 = vpack.c.bf16 %v337, %v334
        %v390 = vpack.c.bf16 %v345, %v342
        %v391 = vpack.c.bf16 %v353, %v350
        %v392 = vpack.c.bf16 %v361, %v358
        %v393 = vpack.c.bf16 %v369, %v366
        %v394 = vpack.c.bf16 %v377, %v374
        %v395 = vpack.c.bf16 %v385, %v382
        %v396 = vld [vmem:[#allocation2 + $0x50] sm:$0xf]
        %v397 = vld [vmem:[#allocation2 + $0x54] sm:$0xf]
        %v398 = vld [vmem:[#allocation2 + $0x58] sm:$0xf]
        %v399 = vld [vmem:[#allocation2 + $0x5c] sm:$0xf]
        %v400 = vld [vmem:[#allocation2 + $0x60] sm:$0xf]
        %v401 = vld [vmem:[#allocation2 + $0x64] sm:$0xf]
        %v402 = vld [vmem:[#allocation2 + $0x68] sm:$0xf]
        %v403 = vld [vmem:[#allocation2 + $0x6c] sm:$0xf]
        %v404 = vld [vmem:[#allocation2 + $0x70] sm:$0xf]
        %v405 = vld [vmem:[#allocation2 + $0x74] sm:$0xf]
        %v406 = vld [vmem:[#allocation2 + $0x78] sm:$0xf]
        %v407 = vld [vmem:[#allocation2 + $0x7c] sm:$0xf]
        %v408 = vld [vmem:[#allocation2 + $0x80] sm:$0xf]
        %v409 = vld [vmem:[#allocation2 + $0x84] sm:$0xf]
        %v410 = vld [vmem:[#allocation2 + $0x88] sm:$0xf]
        %v411 = vld [vmem:[#allocation2 + $0x8c] sm:$0xf]
        %v412 = vld [vmem:[#allocation2 + $0x90] sm:$0xf]
        %v413 = vld [vmem:[#allocation2 + $0x94] sm:$0xf]
        %v414 = vld [vmem:[#allocation2 + $0x98] sm:$0xf]
        %v415 = vld [vmem:[#allocation2 + $0x9c] sm:$0xf]
        %v426 = vunpack.c.l.b16 %v406
        %v427 = vunpack.c.l.b16 %v407
        %v428 = vunpack.c.l.b16 %v408
        %v429 = vunpack.c.l.b16 %v409
        %v430 = vunpack.c.l.b16 %v410
        %v431 = vunpack.c.l.b16 %v411
        %v432 = vunpack.c.l.b16 %v412
        %v433 = vunpack.c.l.b16 %v413
        %v434 = vunpack.c.l.b16 %v414
        %v435 = vunpack.c.l.b16 %v415
        %v436 = vpack.c.b16 %v427, %v426
        %v437 = vpack.c.b16 %v429, %v428
        %v438 = vpack.c.b16 %v431, %v430
        %v439 = vpack.c.b16 %v433, %v432
        %v440 = vpack.c.b16 %v435, %v434
        %vm446 = vcmask 654336
        %v448 = vsel %vm446, %v388, 0
        %v451 = vsel %vm446, %v389, 0
        %v454 = vsel %vm446, %v390, 0
        %v457 = vsel %vm446, %v391, 0
        %v460 = vsel %vm446, %v392, 0
        %v463 = vsel %vm446, %v393, 0
        %v466 = vsel %vm446, %v394, 0
        %v469 = vsel %vm446, %v395, 0
        %471 = vmatprep.subr.bf16.mxu0 0
        %472 = vmatpush1.bf16.msra.mxu0 0
        %473 = vmatprep.subr.bf16.mxu0 0
        %474 = vmatpush1.bf16.msra.mxu0 0
        %475 = vmatprep.subr.bf16.mxu0 0
        %476 = vmatpush1.bf16.msra.mxu0 0
        %477 = vmatprep.subr.bf16.mxu0 0
        %478 = vmatpush1.bf16.msra.mxu0 %v440
        %479 = vmatprep.subr.bf16.mxu0 0
        %480 = vmatpush1.bf16.msra.mxu0 %v439
        %481 = vmatprep.subr.bf16.mxu0 0
        %482 = vmatpush1.bf16.msra.mxu0 %v438
        %483 = vmatprep.subr.bf16.mxu0 0
        %484 = vmatpush1.bf16.msra.mxu0 %v437
        %485 = vmatprep.subr.bf16.mxu0 0
        %486 = vmatpush1.bf16.msra.mxu0 %v436
        %487 = vmatprep.subr.bf16.mxu0 0
        %488 = vmatpush2.bf16.msra.mxu0 0
        %489 = vmatprep.subr.bf16.mxu0 0
        %490 = vmatpush2.bf16.msra.mxu0 0
        %491 = vmatprep.subr.bf16.mxu0 0
        %492 = vmatpush2.bf16.msra.mxu0 0
        %493 = vmatprep.subr.bf16.mxu0 0
        %494 = vmatpush2.bf16.msra.mxu0 0
        %495 = vmatprep.subr.bf16.mxu0 0
        %496 = vmatpush2.bf16.msra.mxu0 0
        %497 = vmatprep.subr.bf16.mxu0 0
        %498 = vmatpush2.bf16.msra.mxu0 0
        %499 = vmatprep.subr.bf16.mxu0 0
        %500 = vmatpush2.bf16.msra.mxu0 0
        %501 = vmatprep.subr.bf16.mxu0 0
        %502 = vmatpush2.bf16.msra.mxu0 0
        %503 = vmatprep.mubr.bf16.mxu0 0
        %504 = vmatmul.mubr.bf16.gmra.mxu0 %v448
        %v505 = vpop.f32.mrf.mxu0
        %v506 = vadd.f32 0.0, %v505
        %v507 = vpop.f32.mrf.mxu0
        %v508 = vpop.f32.mrf.mxu0
        %v509 = vadd.f32 0.0, %v508
        %v510 = vpop.f32.mrf.mxu0
        %511 = vmatprep.mubr.bf16.mxu0 0
        %512 = vmatmul.mubr.bf16.gmra.mxu0 %v451
        %v513 = vpop.f32.mrf.mxu0
        %v514 = vadd.f32 0.0, %v513
        %v515 = vpop.f32.mrf.mxu0
        %v516 = vpop.f32.mrf.mxu0
        %v517 = vadd.f32 0.0, %v516
        %v518 = vpop.f32.mrf.mxu0
        %519 = vmatprep.mubr.bf16.mxu0 0
        %520 = vmatmul.mubr.bf16.gmra.mxu0 %v454
        %v521 = vpop.f32.mrf.mxu0
        %v522 = vadd.f32 0.0, %v521
        %v523 = vpop.f32.mrf.mxu0
        %v524 = vpop.f32.mrf.mxu0
        %v525 = vadd.f32 0.0, %v524
        %v526 = vpop.f32.mrf.mxu0
        %527 = vmatprep.mubr.bf16.mxu0 0
        %528 = vmatmul.mubr.bf16.gmra.mxu0 %v457
        %v529 = vpop.f32.mrf.mxu0
        %v530 = vadd.f32 0.0, %v529
        %v531 = vpop.f32.mrf.mxu0
        %v532 = vpop.f32.mrf.mxu0
        %v533 = vadd.f32 0.0, %v532
        %v534 = vpop.f32.mrf.mxu0
        %535 = vmatprep.mubr.bf16.mxu0 0
        %536 = vmatmul.mubr.bf16.gmra.mxu0 %v460
        %v537 = vpop.f32.mrf.mxu0
        %v538 = vadd.f32 0.0, %v537
        %v539 = vpop.f32.mrf.mxu0
        %v540 = vpop.f32.mrf.mxu0
        %v541 = vadd.f32 0.0, %v540
        %v542 = vpop.f32.mrf.mxu0
        %543 = vmatprep.mubr.bf16.mxu0 0
        %544 = vmatmul.mubr.bf16.gmra.mxu0 %v463
        %v545 = vpop.f32.mrf.mxu0
        %v546 = vadd.f32 0.0, %v545
        %v547 = vpop.f32.mrf.mxu0
        %v548 = vpop.f32.mrf.mxu0
        %v549 = vadd.f32 0.0, %v548
        %v550 = vpop.f32.mrf.mxu0
        %551 = vmatprep.mubr.bf16.mxu0 0
        %552 = vmatmul.mubr.bf16.gmra.mxu0 %v466
        %v553 = vpop.f32.mrf.mxu0
        %v554 = vadd.f32 0.0, %v553
        %v555 = vpop.f32.mrf.mxu0
        %v556 = vpop.f32.mrf.mxu0
        %v557 = vadd.f32 0.0, %v556
        %v558 = vpop.f32.mrf.mxu0
        %559 = vmatprep.mubr.bf16.mxu0 0
        %560 = vmatmul.mubr.bf16.gmra.mxu0 %v469
        %v561 = vpop.f32.mrf.mxu0
        %v562 = vadd.f32 0.0, %v561
        %v563 = vpop.f32.mrf.mxu0
        %v564 = vpop.f32.mrf.mxu0
        %v565 = vadd.f32 0.0, %v564
        %v566 = vpop.f32.mrf.mxu0
        %567 = vdwg.mxu0
        %v578 = vunpack.c.l.b16 %v396
        %v579 = vunpack.c.l.b16 %v397
        %v580 = vunpack.c.l.b16 %v398
        %v581 = vunpack.c.l.b16 %v399
        %v582 = vunpack.c.l.b16 %v400
        %v583 = vunpack.c.l.b16 %v401
        %v584 = vunpack.c.l.b16 %v402
        %v585 = vunpack.c.l.b16 %v403
        %v586 = vunpack.c.l.b16 %v404
        %v587 = vunpack.c.l.b16 %v405
        %v588 = vpack.c.b16 %v579, %v578
        %v589 = vpack.c.b16 %v581, %v580
        %v590 = vpack.c.b16 %v583, %v582
        %v591 = vpack.c.b16 %v585, %v584
        %v592 = vpack.c.b16 %v587, %v586
        %v599 = vsel %vm446, %v275, 0
        %v602 = vsel %vm446, %v276, 0
        %v605 = vsel %vm446, %v277, 0
        %v608 = vsel %vm446, %v278, 0
        %v611 = vsel %vm446, %v279, 0
        %v614 = vsel %vm446, %v280, 0
        %v617 = vsel %vm446, %v281, 0
        %v620 = vsel %vm446, %v282, 0
        %622 = vmatprep.subr.bf16.mxu0 0
        %623 = vmatpush1.bf16.msra.mxu0 0
        %624 = vmatprep.subr.bf16.mxu0 0
        %625 = vmatpush1.bf16.msra.mxu0 0
        %626 = vmatprep.subr.bf16.mxu0 0
        %627 = vmatpush1.bf16.msra.mxu0 0
        %628 = vmatprep.subr.bf16.mxu0 0
        %629 = vmatpush1.bf16.msra.mxu0 %v592
        %630 = vmatprep.subr.bf16.mxu0 0
        %631 = vmatpush1.bf16.msra.mxu0 %v591
        %632 = vmatprep.subr.bf16.mxu0 0
        %633 = vmatpush1.bf16.msra.mxu0 %v590
        %634 = vmatprep.subr.bf16.mxu0 0
        %635 = vmatpush1.bf16.msra.mxu0 %v589
        %636 = vmatprep.subr.bf16.mxu0 0
        %637 = vmatpush1.bf16.msra.mxu0 %v588
        %638 = vmatprep.subr.bf16.mxu0 0
        %639 = vmatpush2.bf16.msra.mxu0 0
        %640 = vmatprep.subr.bf16.mxu0 0
        %641 = vmatpush2.bf16.msra.mxu0 0
        %642 = vmatprep.subr.bf16.mxu0 0
        %643 = vmatpush2.bf16.msra.mxu0 0
        %644 = vmatprep.subr.bf16.mxu0 0
        %645 = vmatpush2.bf16.msra.mxu0 0
        %646 = vmatprep.subr.bf16.mxu0 0
        %647 = vmatpush2.bf16.msra.mxu0 0
        %648 = vmatprep.subr.bf16.mxu0 0
        %649 = vmatpush2.bf16.msra.mxu0 0
        %650 = vmatprep.subr.bf16.mxu0 0
        %651 = vmatpush2.bf16.msra.mxu0 0
        %652 = vmatprep.subr.bf16.mxu0 0
        %653 = vmatpush2.bf16.msra.mxu0 0
        %654 = vmatprep.mubr.bf16.mxu0 0
        %655 = vmatmul.mubr.bf16.gmra.mxu0 %v599
        %v656 = vpop.f32.mrf.mxu0
        %v657 = vadd.f32 %v506, %v656
        %v658 = vpop.f32.mrf.mxu0
        %v659 = vpop.f32.mrf.mxu0
        %v660 = vadd.f32 %v509, %v659
        %v661 = vpop.f32.mrf.mxu0
        %662 = vmatprep.mubr.bf16.mxu0 0
        %663 = vmatmul.mubr.bf16.gmra.mxu0 %v602
        %v664 = vpop.f32.mrf.mxu0
        %v665 = vadd.f32 %v514, %v664
        %v666 = vpop.f32.mrf.mxu0
        %v667 = vpop.f32.mrf.mxu0
        %v668 = vadd.f32 %v517, %v667
        %v669 = vpop.f32.mrf.mxu0
        %670 = vmatprep.mubr.bf16.mxu0 0
        %671 = vmatmul.mubr.bf16.gmra.mxu0 %v605
        %v672 = vpop.f32.mrf.mxu0
        %v673 = vadd.f32 %v522, %v672
        %v674 = vpop.f32.mrf.mxu0
        %v675 = vpop.f32.mrf.mxu0
        %v676 = vadd.f32 %v525, %v675
        %v677 = vpop.f32.mrf.mxu0
        %678 = vmatprep.mubr.bf16.mxu0 0
        %679 = vmatmul.mubr.bf16.gmra.mxu0 %v608
        %v680 = vpop.f32.mrf.mxu0
        %v681 = vadd.f32 %v530, %v680
        %v682 = vpop.f32.mrf.mxu0
        %v683 = vpop.f32.mrf.mxu0
        %v684 = vadd.f32 %v533, %v683
        %v685 = vpop.f32.mrf.mxu0
        %686 = vmatprep.mubr.bf16.mxu0 0
        %687 = vmatmul.mubr.bf16.gmra.mxu0 %v611
        %v688 = vpop.f32.mrf.mxu0
        %v689 = vadd.f32 %v538, %v688
        %v690 = vpop.f32.mrf.mxu0
        %v691 = vpop.f32.mrf.mxu0
        %v692 = vadd.f32 %v541, %v691
        %v693 = vpop.f32.mrf.mxu0
        %694 = vmatprep.mubr.bf16.mxu0 0
        %695 = vmatmul.mubr.bf16.gmra.mxu0 %v614
        %v696 = vpop.f32.mrf.mxu0
        %v697 = vadd.f32 %v546, %v696
        %v698 = vpop.f32.mrf.mxu0
        %v699 = vpop.f32.mrf.mxu0
        %v700 = vadd.f32 %v549, %v699
        %v701 = vpop.f32.mrf.mxu0
        %702 = vmatprep.mubr.bf16.mxu0 0
        %703 = vmatmul.mubr.bf16.gmra.mxu0 %v617
        %v704 = vpop.f32.mrf.mxu0
        %v705 = vadd.f32 %v554, %v704
        %v706 = vpop.f32.mrf.mxu0
        %v707 = vpop.f32.mrf.mxu0
        %v708 = vadd.f32 %v557, %v707
        %v709 = vpop.f32.mrf.mxu0
        %710 = vmatprep.mubr.bf16.mxu0 0
        %711 = vmatmul.mubr.bf16.gmra.mxu0 %v620
        %v712 = vpop.f32.mrf.mxu0
        %v713 = vadd.f32 %v562, %v712
        %v714 = vpop.f32.mrf.mxu0
        %v715 = vpop.f32.mrf.mxu0
        %v716 = vadd.f32 %v565, %v715
        %v717 = vpop.f32.mrf.mxu0
        %718 = vdwg.mxu0
        %v719 = vld [vmem:[#allocation2 + $0xa0] sm:$0xf]
        %v720 = vunpack.c.l.bf16 %v719
        %v721 = vlaneseq
        %v722 = vshrl.u32 %v721, 7
        %v723 = vsub.s32 0, %v722
        %v724 = vrot.slane %v720, %v723
        %v725 = vadd.f32 %v657, %v724
        %v726 = vadd.f32 %v660, %v724
        %v727 = vadd.f32 %v665, %v724
        %v728 = vadd.f32 %v668, %v724
        %v729 = vadd.f32 %v673, %v724
        %v730 = vadd.f32 %v676, %v724
        %v731 = vadd.f32 %v681, %v724
        %v732 = vadd.f32 %v684, %v724
        %v733 = vadd.f32 %v689, %v724
        %v734 = vadd.f32 %v692, %v724
        %v735 = vadd.f32 %v697, %v724
        %v736 = vadd.f32 %v700, %v724
        %v737 = vadd.f32 %v705, %v724
        %v738 = vadd.f32 %v708, %v724
        %v739 = vadd.f32 %v713, %v724
        %v740 = vadd.f32 %v716, %v724
        %v741 = vmax.f32 %v725, 0.0
        %v742 = vmax.f32 %v726, 0.0
        %v743 = vmax.f32 %v727, 0.0
        %v744 = vmax.f32 %v728, 0.0
        %v745 = vmax.f32 %v729, 0.0
        %v746 = vmax.f32 %v730, 0.0
        %v747 = vmax.f32 %v731, 0.0
        %v748 = vmax.f32 %v732, 0.0
        %v749 = vmax.f32 %v733, 0.0
        %v750 = vmax.f32 %v734, 0.0
        %v751 = vmax.f32 %v735, 0.0
        %v752 = vmax.f32 %v736, 0.0
        %v753 = vmax.f32 %v737, 0.0
        %v754 = vmax.f32 %v738, 0.0
        %v755 = vmax.f32 %v739, 0.0
        %v756 = vmax.f32 %v740, 0.0
        %v757 = vpack.c.bf16 %v742, %v741
        %v758 = vpack.c.bf16 %v744, %v743
        %v759 = vpack.c.bf16 %v746, %v745
        %v760 = vpack.c.bf16 %v748, %v747
        %v761 = vpack.c.bf16 %v750, %v749
        %v762 = vpack.c.bf16 %v752, %v751
        %v763 = vpack.c.bf16 %v754, %v753
        %v764 = vpack.c.bf16 %v756, %v755
        %765 = vmatprep.subr.bf16.mxu0 0
        %766 = vmatpush1.bf16.msra.mxu0 %v764
        %767 = vmatprep.subr.bf16.mxu0 0
        %768 = vmatpush1.bf16.msra.mxu0 %v763
        %769 = vmatprep.subr.bf16.mxu0 0
        %770 = vmatpush1.bf16.msra.mxu0 %v762
        %771 = vmatprep.subr.bf16.mxu0 0
        %772 = vmatpush1.bf16.msra.mxu0 %v761
        %773 = vmatprep.subr.bf16.mxu0 0
        %774 = vmatpush1.bf16.msra.mxu0 %v760
        %775 = vmatprep.subr.bf16.mxu0 0
        %776 = vmatpush1.bf16.msra.mxu0 %v759
        %777 = vmatprep.subr.bf16.mxu0 0
        %778 = vmatpush1.bf16.msra.mxu0 %v758
        %779 = vmatprep.subr.bf16.mxu0 0
        %780 = vmatpush1.bf16.msra.mxu0 %v757
        %781 = vmatprep.subr.bf16.mxu0 0
        %782 = vmatpush2.bf16.msra.mxu0 0
        %783 = vmatprep.subr.bf16.mxu0 0
        %784 = vmatpush2.bf16.msra.mxu0 0
        %785 = vmatprep.subr.bf16.mxu0 0
        %786 = vmatpush2.bf16.msra.mxu0 0
        %787 = vmatprep.subr.bf16.mxu0 0
        %788 = vmatpush2.bf16.msra.mxu0 0
        %789 = vmatprep.subr.bf16.mxu0 0
        %790 = vmatpush2.bf16.msra.mxu0 0
        %791 = vmatprep.subr.bf16.mxu0 0
        %792 = vmatpush2.bf16.msra.mxu0 0
        %793 = vmatprep.subr.bf16.mxu0 0
        %794 = vmatpush2.bf16.msra.mxu0 0
        %795 = vmatprep.subr.bf16.mxu0 0
        %796 = vmatpush2.bf16.msra.mxu0 0
        %797 = vmatprep.mubr.bf16.mxu0 0
        %798 = vmatmul.mubr.bf16.gmra.mxu0 %v227
        %v799 = vpop.f32.mrf.mxu0
        %v800 = vadd.f32 0.0, %v799
        %v801 = vpop.f32.mrf.mxu0
        %v802 = vpop.f32.mrf.mxu0
        %v803 = vadd.f32 0.0, %v802
        %v804 = vpop.f32.mrf.mxu0
        %805 = vmatprep.mubr.bf16.mxu0 0
        %806 = vmatmul.mubr.bf16.gmra.mxu0 %v228
        %v807 = vpop.f32.mrf.mxu0
        %v808 = vadd.f32 0.0, %v807
        %v809 = vpop.f32.mrf.mxu0
        %v810 = vpop.f32.mrf.mxu0
        %v811 = vadd.f32 0.0, %v810
        %v812 = vpop.f32.mrf.mxu0
        %813 = vmatprep.mubr.bf16.mxu0 0
        %814 = vmatmul.mubr.bf16.gmra.mxu0 %v229
        %v815 = vpop.f32.mrf.mxu0
        %v816 = vadd.f32 0.0, %v815
        %v817 = vpop.f32.mrf.mxu0
        %v818 = vpop.f32.mrf.mxu0
        %v819 = vadd.f32 0.0, %v818
        %v820 = vpop.f32.mrf.mxu0
        %821 = vmatprep.mubr.bf16.mxu0 0
        %822 = vmatmul.mubr.bf16.gmra.mxu0 %v230
        %v823 = vpop.f32.mrf.mxu0
        %v824 = vadd.f32 0.0, %v823
        %v825 = vpop.f32.mrf.mxu0
        %v826 = vpop.f32.mrf.mxu0
        %v827 = vadd.f32 0.0, %v826
        %v828 = vpop.f32.mrf.mxu0
        %829 = vmatprep.mubr.bf16.mxu0 0
        %830 = vmatmul.mubr.bf16.gmra.mxu0 %v231
        %v831 = vpop.f32.mrf.mxu0
        %v832 = vadd.f32 0.0, %v831
        %v833 = vpop.f32.mrf.mxu0
        %v834 = vpop.f32.mrf.mxu0
        %v835 = vadd.f32 0.0, %v834
        %v836 = vpop.f32.mrf.mxu0
        %837 = vmatprep.mubr.bf16.mxu0 0
        %838 = vmatmul.mubr.bf16.gmra.mxu0 %v232
        %v839 = vpop.f32.mrf.mxu0
        %v840 = vadd.f32 0.0, %v839
        %v841 = vpop.f32.mrf.mxu0
        %v842 = vpop.f32.mrf.mxu0
        %v843 = vadd.f32 0.0, %v842
        %v844 = vpop.f32.mrf.mxu0
        %845 = vmatprep.mubr.bf16.mxu0 0
        %846 = vmatmul.mubr.bf16.gmra.mxu0 %v233
        %v847 = vpop.f32.mrf.mxu0
        %v848 = vadd.f32 0.0, %v847
        %v849 = vpop.f32.mrf.mxu0
        %v850 = vpop.f32.mrf.mxu0
        %v851 = vadd.f32 0.0, %v850
        %v852 = vpop.f32.mrf.mxu0
        %853 = vmatprep.mubr.bf16.mxu0 0
        %854 = vmatmul.mubr.bf16.gmra.mxu0 %v234
        %v855 = vpop.f32.mrf.mxu0
        %v856 = vadd.f32 0.0, %v855
        %v857 = vpop.f32.mrf.mxu0
        %v858 = vpop.f32.mrf.mxu0
        %v859 = vadd.f32 0.0, %v858
        %v860 = vpop.f32.mrf.mxu0
        %861 = vdwg.mxu0
        %v862 = vpack.c.bf16 %v803, %v800
        %v863 = vpack.c.bf16 %v811, %v808
        %v864 = vpack.c.bf16 %v819, %v816
        %v865 = vpack.c.bf16 %v827, %v824
        %v866 = vpack.c.bf16 %v835, %v832
        %v867 = vpack.c.bf16 %v843, %v840
        %v868 = vpack.c.bf16 %v851, %v848
        %v869 = vpack.c.bf16 %v859, %v856
        %v870 = vld [vmem:[#allocation2 + $0xa8] sm:$0xf]
        %v871 = vld [vmem:[#allocation2 + $0xac] sm:$0xf]
        %v872 = vld [vmem:[#allocation2 + $0xb0] sm:$0xf]
        %v873 = vld [vmem:[#allocation2 + $0xb4] sm:$0xf]
        %v874 = vld [vmem:[#allocation2 + $0xb8] sm:$0xf]
        %v875 = vld [vmem:[#allocation2 + $0xbc] sm:$0xf]
        %v876 = vld [vmem:[#allocation2 + $0xc0] sm:$0xf]
        %v877 = vld [vmem:[#allocation2 + $0xc4] sm:$0xf]
        %v878 = vld [vmem:[#allocation2 + $0xc8] sm:$0xf]
        %v879 = vld [vmem:[#allocation2 + $0xcc] sm:$0xf]
        %v880 = vld [vmem:[#allocation2 + $0xd0] sm:$0xf]
        %v881 = vld [vmem:[#allocation2 + $0xd4] sm:$0xf]
        %v882 = vld [vmem:[#allocation2 + $0xd8] sm:$0xf]
        %v883 = vld [vmem:[#allocation2 + $0xdc] sm:$0xf]
        %v884 = vld [vmem:[#allocation2 + $0xe0] sm:$0xf]
        %v885 = vld [vmem:[#allocation2 + $0xe4] sm:$0xf]
        %v886 = vld [vmem:[#allocation2 + $0xe8] sm:$0xf]
        %v887 = vld [vmem:[#allocation2 + $0xec] sm:$0xf]
        %v888 = vld [vmem:[#allocation2 + $0xf0] sm:$0xf]
        %v889 = vld [vmem:[#allocation2 + $0xf4] sm:$0xf]
        %v890 = vld [vmem:[#allocation2 + $0xf8] sm:$0xf]
        %v891 = vld [vmem:[#allocation2 + $0xfc] sm:$0xf]
        %v892 = vld [vmem:[#allocation2 + $0x100] sm:$0xf]
        %v893 = vld [vmem:[#allocation2 + $0x104] sm:$0xf]
        %v894 = vld [vmem:[#allocation2 + $0x108] sm:$0xf]
        %v895 = vld [vmem:[#allocation2 + $0x10c] sm:$0xf]
        %v896 = vld [vmem:[#allocation2 + $0x110] sm:$0xf]
        %v897 = vld [vmem:[#allocation2 + $0x114] sm:$0xf]
        %v898 = vld [vmem:[#allocation2 + $0x118] sm:$0xf]
        %v899 = vld [vmem:[#allocation2 + $0x11c] sm:$0xf]
        %v900 = vld [vmem:[#allocation2 + $0x120] sm:$0xf]
        %v901 = vld [vmem:[#allocation2 + $0x124] sm:$0xf]
        %v918 = vunpack.c.l.b16 %v886
        %v919 = vunpack.c.l.b16 %v887
        %v920 = vunpack.c.l.b16 %v888
        %v921 = vunpack.c.l.b16 %v889
        %v922 = vunpack.c.l.b16 %v890
        %v923 = vunpack.c.l.b16 %v891
        %v924 = vunpack.c.l.b16 %v892
        %v925 = vunpack.c.l.b16 %v893
        %v926 = vunpack.c.l.b16 %v894
        %v927 = vunpack.c.l.b16 %v895
        %v928 = vunpack.c.l.b16 %v896
        %v929 = vunpack.c.l.b16 %v897
        %v930 = vunpack.c.l.b16 %v898
        %v931 = vunpack.c.l.b16 %v899
        %v932 = vunpack.c.l.b16 %v900
        %v933 = vunpack.c.l.b16 %v901
        %v934 = vpack.c.b16 %v919, %v918
        %v935 = vpack.c.b16 %v921, %v920
        %v936 = vpack.c.b16 %v923, %v922
        %v937 = vpack.c.b16 %v925, %v924
        %v938 = vpack.c.b16 %v927, %v926
        %v939 = vpack.c.b16 %v929, %v928
        %v940 = vpack.c.b16 %v931, %v930
        %v941 = vpack.c.b16 %v933, %v932
        %950 = vmatprep.subr.bf16.mxu0 0
        %951 = vmatpush1.bf16.msra.mxu0 %v941
        %952 = vmatprep.subr.bf16.mxu0 0
        %953 = vmatpush1.bf16.msra.mxu0 %v940
        %954 = vmatprep.subr.bf16.mxu0 0
        %955 = vmatpush1.bf16.msra.mxu0 %v939
        %956 = vmatprep.subr.bf16.mxu0 0
        %957 = vmatpush1.bf16.msra.mxu0 %v938
        %958 = vmatprep.subr.bf16.mxu0 0
        %959 = vmatpush1.bf16.msra.mxu0 %v937
        %960 = vmatprep.subr.bf16.mxu0 0
        %961 = vmatpush1.bf16.msra.mxu0 %v936
        %962 = vmatprep.subr.bf16.mxu0 0
        %963 = vmatpush1.bf16.msra.mxu0 %v935
        %964 = vmatprep.subr.bf16.mxu0 0
        %965 = vmatpush1.bf16.msra.mxu0 %v934
        %966 = vmatprep.subr.bf16.mxu0 0
        %967 = vmatpush2.bf16.msra.mxu0 0
        %968 = vmatprep.subr.bf16.mxu0 0
        %969 = vmatpush2.bf16.msra.mxu0 0
        %970 = vmatprep.subr.bf16.mxu0 0
        %971 = vmatpush2.bf16.msra.mxu0 0
        %972 = vmatprep.subr.bf16.mxu0 0
        %973 = vmatpush2.bf16.msra.mxu0 0
        %974 = vmatprep.subr.bf16.mxu0 0
        %975 = vmatpush2.bf16.msra.mxu0 0
        %976 = vmatprep.subr.bf16.mxu0 0
        %977 = vmatpush2.bf16.msra.mxu0 0
        %978 = vmatprep.subr.bf16.mxu0 0
        %979 = vmatpush2.bf16.msra.mxu0 0
        %980 = vmatprep.subr.bf16.mxu0 0
        %981 = vmatpush2.bf16.msra.mxu0 0
        %982 = vmatprep.mubr.bf16.mxu0 0
        %983 = vmatmul.mubr.bf16.gmra.mxu0 %v862
        %v984 = vpop.f32.mrf.mxu0
        %v985 = vadd.f32 0.0, %v984
        %v986 = vpop.f32.mrf.mxu0
        %v987 = vpop.f32.mrf.mxu0
        %v988 = vadd.f32 0.0, %v987
        %v989 = vpop.f32.mrf.mxu0
        %990 = vmatprep.mubr.bf16.mxu0 0
        %991 = vmatmul.mubr.bf16.gmra.mxu0 %v863
        %v992 = vpop.f32.mrf.mxu0
        %v993 = vadd.f32 0.0, %v992
        %v994 = vpop.f32.mrf.mxu0
        %v995 = vpop.f32.mrf.mxu0
        %v996 = vadd.f32 0.0, %v995
        %v997 = vpop.f32.mrf.mxu0
        %998 = vmatprep.mubr.bf16.mxu0 0
        %999 = vmatmul.mubr.bf16.gmra.mxu0 %v864
        %v1000 = vpop.f32.mrf.mxu0
        %v1001 = vadd.f32 0.0, %v1000
        %v1002 = vpop.f32.mrf.mxu0
        %v1003 = vpop.f32.mrf.mxu0
        %v1004 = vadd.f32 0.0, %v1003
        %v1005 = vpop.f32.mrf.mxu0
        %1006 = vmatprep.mubr.bf16.mxu0 0
        %1007 = vmatmul.mubr.bf16.gmra.mxu0 %v865
        %v1008 = vpop.f32.mrf.mxu0
        %v1009 = vadd.f32 0.0, %v1008
        %v1010 = vpop.f32.mrf.mxu0
        %v1011 = vpop.f32.mrf.mxu0
        %v1012 = vadd.f32 0.0, %v1011
        %v1013 = vpop.f32.mrf.mxu0
        %1014 = vmatprep.mubr.bf16.mxu0 0
        %1015 = vmatmul.mubr.bf16.gmra.mxu0 %v866
        %v1016 = vpop.f32.mrf.mxu0
        %v1017 = vadd.f32 0.0, %v1016
        %v1018 = vpop.f32.mrf.mxu0
        %v1019 = vpop.f32.mrf.mxu0
        %v1020 = vadd.f32 0.0, %v1019
        %v1021 = vpop.f32.mrf.mxu0
        %1022 = vmatprep.mubr.bf16.mxu0 0
        %1023 = vmatmul.mubr.bf16.gmra.mxu0 %v867
        %v1024 = vpop.f32.mrf.mxu0
        %v1025 = vadd.f32 0.0, %v1024
        %v1026 = vpop.f32.mrf.mxu0
        %v1027 = vpop.f32.mrf.mxu0
        %v1028 = vadd.f32 0.0, %v1027
        %v1029 = vpop.f32.mrf.mxu0
        %1030 = vmatprep.mubr.bf16.mxu0 0
        %1031 = vmatmul.mubr.bf16.gmra.mxu0 %v868
        %v1032 = vpop.f32.mrf.mxu0
        %v1033 = vadd.f32 0.0, %v1032
        %v1034 = vpop.f32.mrf.mxu0
        %v1035 = vpop.f32.mrf.mxu0
        %v1036 = vadd.f32 0.0, %v1035
        %v1037 = vpop.f32.mrf.mxu0
        %1038 = vmatprep.mubr.bf16.mxu0 0
        %1039 = vmatmul.mubr.bf16.gmra.mxu0 %v869
        %v1040 = vpop.f32.mrf.mxu0
        %v1041 = vadd.f32 0.0, %v1040
        %v1042 = vpop.f32.mrf.mxu0
        %v1043 = vpop.f32.mrf.mxu0
        %v1044 = vadd.f32 0.0, %v1043
        %v1045 = vpop.f32.mrf.mxu0
        %1046 = vdwg.mxu0
        %v1063 = vunpack.c.l.b16 %v870
        %v1064 = vunpack.c.l.b16 %v871
        %v1065 = vunpack.c.l.b16 %v872
        %v1066 = vunpack.c.l.b16 %v873
        %v1067 = vunpack.c.l.b16 %v874
        %v1068 = vunpack.c.l.b16 %v875
        %v1069 = vunpack.c.l.b16 %v876
        %v1070 = vunpack.c.l.b16 %v877
        %v1071 = vunpack.c.l.b16 %v878
        %v1072 = vunpack.c.l.b16 %v879
        %v1073 = vunpack.c.l.b16 %v880
        %v1074 = vunpack.c.l.b16 %v881
        %v1075 = vunpack.c.l.b16 %v882
        %v1076 = vunpack.c.l.b16 %v883
        %v1077 = vunpack.c.l.b16 %v884
        %v1078 = vunpack.c.l.b16 %v885
        %v1079 = vpack.c.b16 %v1064, %v1063
        %v1080 = vpack.c.b16 %v1066, %v1065
        %v1081 = vpack.c.b16 %v1068, %v1067
        %v1082 = vpack.c.b16 %v1070, %v1069
        %v1083 = vpack.c.b16 %v1072, %v1071
        %v1084 = vpack.c.b16 %v1074, %v1073
        %v1085 = vpack.c.b16 %v1076, %v1075
        %v1086 = vpack.c.b16 %v1078, %v1077
        %1095 = vmatprep.subr.bf16.mxu0 0
        %1096 = vmatpush1.bf16.msra.mxu0 %v1086
        %1097 = vmatprep.subr.bf16.mxu0 0
        %1098 = vmatpush1.bf16.msra.mxu0 %v1085
        %1099 = vmatprep.subr.bf16.mxu0 0
        %1100 = vmatpush1.bf16.msra.mxu0 %v1084
        %1101 = vmatprep.subr.bf16.mxu0 0
        %1102 = vmatpush1.bf16.msra.mxu0 %v1083
        %1103 = vmatprep.subr.bf16.mxu0 0
        %1104 = vmatpush1.bf16.msra.mxu0 %v1082
        %1105 = vmatprep.subr.bf16.mxu0 0
        %1106 = vmatpush1.bf16.msra.mxu0 %v1081
        %1107 = vmatprep.subr.bf16.mxu0 0
        %1108 = vmatpush1.bf16.msra.mxu0 %v1080
        %1109 = vmatprep.subr.bf16.mxu0 0
        %1110 = vmatpush1.bf16.msra.mxu0 %v1079
        %1111 = vmatprep.subr.bf16.mxu0 0
        %1112 = vmatpush2.bf16.msra.mxu0 0
        %1113 = vmatprep.subr.bf16.mxu0 0
        %1114 = vmatpush2.bf16.msra.mxu0 0
        %1115 = vmatprep.subr.bf16.mxu0 0
        %1116 = vmatpush2.bf16.msra.mxu0 0
        %1117 = vmatprep.subr.bf16.mxu0 0
        %1118 = vmatpush2.bf16.msra.mxu0 0
        %1119 = vmatprep.subr.bf16.mxu0 0
        %1120 = vmatpush2.bf16.msra.mxu0 0
        %1121 = vmatprep.subr.bf16.mxu0 0
        %1122 = vmatpush2.bf16.msra.mxu0 0
        %1123 = vmatprep.subr.bf16.mxu0 0
        %1124 = vmatpush2.bf16.msra.mxu0 0
        %1125 = vmatprep.subr.bf16.mxu0 0
        %1126 = vmatpush2.bf16.msra.mxu0 0
        %1127 = vmatprep.mubr.bf16.mxu0 0
        %1128 = vmatmul.mubr.bf16.gmra.mxu0 %v757
        %v1129 = vpop.f32.mrf.mxu0
        %v1130 = vadd.f32 %v985, %v1129
        %v1131 = vpop.f32.mrf.mxu0
        %v1132 = vpop.f32.mrf.mxu0
        %v1133 = vadd.f32 %v988, %v1132
        %v1134 = vpop.f32.mrf.mxu0
        %1135 = vmatprep.mubr.bf16.mxu0 0
        %1136 = vmatmul.mubr.bf16.gmra.mxu0 %v758
        %v1137 = vpop.f32.mrf.mxu0
        %v1138 = vadd.f32 %v993, %v1137
        %v1139 = vpop.f32.mrf.mxu0
        %v1140 = vpop.f32.mrf.mxu0
        %v1141 = vadd.f32 %v996, %v1140
        %v1142 = vpop.f32.mrf.mxu0
        %1143 = vmatprep.mubr.bf16.mxu0 0
        %1144 = vmatmul.mubr.bf16.gmra.mxu0 %v759
        %v1145 = vpop.f32.mrf.mxu0
        %v1146 = vadd.f32 %v1001, %v1145
        %v1147 = vpop.f32.mrf.mxu0
        %v1148 = vpop.f32.mrf.mxu0
        %v1149 = vadd.f32 %v1004, %v1148
        %v1150 = vpop.f32.mrf.mxu0
        %1151 = vmatprep.mubr.bf16.mxu0 0
        %1152 = vmatmul.mubr.bf16.gmra.mxu0 %v760
        %v1153 = vpop.f32.mrf.mxu0
        %v1154 = vadd.f32 %v1009, %v1153
        %v1155 = vpop.f32.mrf.mxu0
        %v1156 = vpop.f32.mrf.mxu0
        %v1157 = vadd.f32 %v1012, %v1156
        %v1158 = vpop.f32.mrf.mxu0
        %1159 = vmatprep.mubr.bf16.mxu0 0
        %1160 = vmatmul.mubr.bf16.gmra.mxu0 %v761
        %v1161 = vpop.f32.mrf.mxu0
        %v1162 = vadd.f32 %v1017, %v1161
        %v1163 = vpop.f32.mrf.mxu0
        %v1164 = vpop.f32.mrf.mxu0
        %v1165 = vadd.f32 %v1020, %v1164
        %v1166 = vpop.f32.mrf.mxu0
        %1167 = vmatprep.mubr.bf16.mxu0 0
        %1168 = vmatmul.mubr.bf16.gmra.mxu0 %v762
        %v1169 = vpop.f32.mrf.mxu0
        %v1170 = vadd.f32 %v1025, %v1169
        %v1171 = vpop.f32.mrf.mxu0
        %v1172 = vpop.f32.mrf.mxu0
        %v1173 = vadd.f32 %v1028, %v1172
        %v1174 = vpop.f32.mrf.mxu0
        %1175 = vmatprep.mubr.bf16.mxu0 0
        %1176 = vmatmul.mubr.bf16.gmra.mxu0 %v763
        %v1177 = vpop.f32.mrf.mxu0
        %v1178 = vadd.f32 %v1033, %v1177
        %v1179 = vpop.f32.mrf.mxu0
        %v1180 = vpop.f32.mrf.mxu0
        %v1181 = vadd.f32 %v1036, %v1180
        %v1182 = vpop.f32.mrf.mxu0
        %1183 = vmatprep.mubr.bf16.mxu0 0
        %1184 = vmatmul.mubr.bf16.gmra.mxu0 %v764
        %v1185 = vpop.f32.mrf.mxu0
        %v1186 = vadd.f32 %v1041, %v1185
        %v1187 = vpop.f32.mrf.mxu0
        %v1188 = vpop.f32.mrf.mxu0
        %v1189 = vadd.f32 %v1044, %v1188
        %v1190 = vpop.f32.mrf.mxu0
        %1191 = vdwg.mxu0
        %v1192 = vld [vmem:[#allocation2 + $0x128] sm:$0xf]
        %v1193 = vunpack.c.l.bf16 %v1192
        %v1194 = vlaneseq
        %v1195 = vshrl.u32 %v1194, 7
        %v1196 = vsub.s32 0, %v1195
        %v1197 = vrot.slane %v1193, %v1196
        %v1198 = vadd.f32 %v1130, %v1197
        %v1199 = vadd.f32 %v1133, %v1197
        %v1200 = vadd.f32 %v1138, %v1197
        %v1201 = vadd.f32 %v1141, %v1197
        %v1202 = vadd.f32 %v1146, %v1197
        %v1203 = vadd.f32 %v1149, %v1197
        %v1204 = vadd.f32 %v1154, %v1197
        %v1205 = vadd.f32 %v1157, %v1197
        %v1206 = vadd.f32 %v1162, %v1197
        %v1207 = vadd.f32 %v1165, %v1197
        %v1208 = vadd.f32 %v1170, %v1197
        %v1209 = vadd.f32 %v1173, %v1197
        %v1210 = vadd.f32 %v1178, %v1197
        %v1211 = vadd.f32 %v1181, %v1197
        %v1212 = vadd.f32 %v1186, %v1197
        %v1213 = vadd.f32 %v1189, %v1197
        %v1214 = vmax.f32 %v1198, 0.0
        %v1215 = vmax.f32 %v1199, 0.0
        %v1216 = vmax.f32 %v1200, 0.0
        %v1217 = vmax.f32 %v1201, 0.0
        %v1218 = vmax.f32 %v1202, 0.0
        %v1219 = vmax.f32 %v1203, 0.0
        %v1220 = vmax.f32 %v1204, 0.0
        %v1221 = vmax.f32 %v1205, 0.0
        %v1222 = vmax.f32 %v1206, 0.0
        %v1223 = vmax.f32 %v1207, 0.0
        %v1224 = vmax.f32 %v1208, 0.0
        %v1225 = vmax.f32 %v1209, 0.0
        %v1226 = vmax.f32 %v1210, 0.0
        %v1227 = vmax.f32 %v1211, 0.0
        %v1228 = vmax.f32 %v1212, 0.0
        %v1229 = vmax.f32 %v1213, 0.0
        %v1230 = vpack.c.bf16 %v1215, %v1214
        %v1231 = vpack.c.bf16 %v1217, %v1216
        %v1232 = vpack.c.bf16 %v1219, %v1218
        %v1233 = vpack.c.bf16 %v1221, %v1220
        %v1234 = vpack.c.bf16 %v1223, %v1222
        %v1235 = vpack.c.bf16 %v1225, %v1224
        %v1236 = vpack.c.bf16 %v1227, %v1226
        %v1237 = vpack.c.bf16 %v1229, %v1228
        %1238 = vmatprep.subr.bf16.mxu0 0
        %1239 = vmatpush1.bf16.msra.mxu0 %v1237
        %1240 = vmatprep.subr.bf16.mxu0 0
        %1241 = vmatpush1.bf16.msra.mxu0 %v1236
        %1242 = vmatprep.subr.bf16.mxu0 0
        %1243 = vmatpush1.bf16.msra.mxu0 %v1235
        %1244 = vmatprep.subr.bf16.mxu0 0
        %1245 = vmatpush1.bf16.msra.mxu0 %v1234
        %1246 = vmatprep.subr.bf16.mxu0 0
        %1247 = vmatpush1.bf16.msra.mxu0 %v1233
        %1248 = vmatprep.subr.bf16.mxu0 0
        %1249 = vmatpush1.bf16.msra.mxu0 %v1232
        %1250 = vmatprep.subr.bf16.mxu0 0
        %1251 = vmatpush1.bf16.msra.mxu0 %v1231
        %1252 = vmatprep.subr.bf16.mxu0 0
        %1253 = vmatpush1.bf16.msra.mxu0 %v1230
        %1254 = vmatprep.subr.bf16.mxu0 0
        %1255 = vmatpush2.bf16.msra.mxu0 0
        %1256 = vmatprep.subr.bf16.mxu0 0
        %1257 = vmatpush2.bf16.msra.mxu0 0
        %1258 = vmatprep.subr.bf16.mxu0 0
        %1259 = vmatpush2.bf16.msra.mxu0 0
        %1260 = vmatprep.subr.bf16.mxu0 0
        %1261 = vmatpush2.bf16.msra.mxu0 0
        %1262 = vmatprep.subr.bf16.mxu0 0
        %1263 = vmatpush2.bf16.msra.mxu0 0
        %1264 = vmatprep.subr.bf16.mxu0 0
        %1265 = vmatpush2.bf16.msra.mxu0 0
        %1266 = vmatprep.subr.bf16.mxu0 0
        %1267 = vmatpush2.bf16.msra.mxu0 0
        %1268 = vmatprep.subr.bf16.mxu0 0
        %1269 = vmatpush2.bf16.msra.mxu0 0
        %1270 = vmatprep.mubr.bf16.mxu0 0
        %1271 = vmatmul.mubr.bf16.gmra.mxu0 %v227
        %v1272 = vpop.f32.mrf.mxu0
        %v1273 = vadd.f32 0.0, %v1272
        %v1274 = vpop.f32.mrf.mxu0
        %v1275 = vpop.f32.mrf.mxu0
        %v1276 = vadd.f32 0.0, %v1275
        %v1277 = vpop.f32.mrf.mxu0
        %1278 = vmatprep.mubr.bf16.mxu0 0
        %1279 = vmatmul.mubr.bf16.gmra.mxu0 %v228
        %v1280 = vpop.f32.mrf.mxu0
        %v1281 = vadd.f32 0.0, %v1280
        %v1282 = vpop.f32.mrf.mxu0
        %v1283 = vpop.f32.mrf.mxu0
        %v1284 = vadd.f32 0.0, %v1283
        %v1285 = vpop.f32.mrf.mxu0
        %1286 = vmatprep.mubr.bf16.mxu0 0
        %1287 = vmatmul.mubr.bf16.gmra.mxu0 %v229
        %v1288 = vpop.f32.mrf.mxu0
        %v1289 = vadd.f32 0.0, %v1288
        %v1290 = vpop.f32.mrf.mxu0
        %v1291 = vpop.f32.mrf.mxu0
        %v1292 = vadd.f32 0.0, %v1291
        %v1293 = vpop.f32.mrf.mxu0
        %1294 = vmatprep.mubr.bf16.mxu0 0
        %1295 = vmatmul.mubr.bf16.gmra.mxu0 %v230
        %v1296 = vpop.f32.mrf.mxu0
        %v1297 = vadd.f32 0.0, %v1296
        %v1298 = vpop.f32.mrf.mxu0
        %v1299 = vpop.f32.mrf.mxu0
        %v1300 = vadd.f32 0.0, %v1299
        %v1301 = vpop.f32.mrf.mxu0
        %1302 = vmatprep.mubr.bf16.mxu0 0
        %1303 = vmatmul.mubr.bf16.gmra.mxu0 %v231
        %v1304 = vpop.f32.mrf.mxu0
        %v1305 = vadd.f32 0.0, %v1304
        %v1306 = vpop.f32.mrf.mxu0
        %v1307 = vpop.f32.mrf.mxu0
        %v1308 = vadd.f32 0.0, %v1307
        %v1309 = vpop.f32.mrf.mxu0
        %1310 = vmatprep.mubr.bf16.mxu0 0
        %1311 = vmatmul.mubr.bf16.gmra.mxu0 %v232
        %v1312 = vpop.f32.mrf.mxu0
        %v1313 = vadd.f32 0.0, %v1312
        %v1314 = vpop.f32.mrf.mxu0
        %v1315 = vpop.f32.mrf.mxu0
        %v1316 = vadd.f32 0.0, %v1315
        %v1317 = vpop.f32.mrf.mxu0
        %1318 = vmatprep.mubr.bf16.mxu0 0
        %1319 = vmatmul.mubr.bf16.gmra.mxu0 %v233
        %v1320 = vpop.f32.mrf.mxu0
        %v1321 = vadd.f32 0.0, %v1320
        %v1322 = vpop.f32.mrf.mxu0
        %v1323 = vpop.f32.mrf.mxu0
        %v1324 = vadd.f32 0.0, %v1323
        %v1325 = vpop.f32.mrf.mxu0
        %1326 = vmatprep.mubr.bf16.mxu0 0
        %1327 = vmatmul.mubr.bf16.gmra.mxu0 %v234
        %v1328 = vpop.f32.mrf.mxu0
        %v1329 = vadd.f32 0.0, %v1328
        %v1330 = vpop.f32.mrf.mxu0
        %v1331 = vpop.f32.mrf.mxu0
        %v1332 = vadd.f32 0.0, %v1331
        %v1333 = vpop.f32.mrf.mxu0
        %1334 = vdwg.mxu0
        %v1335 = vpack.c.bf16 %v1276, %v1273
        %v1336 = vpack.c.bf16 %v1284, %v1281
        %v1337 = vpack.c.bf16 %v1292, %v1289
        %v1338 = vpack.c.bf16 %v1300, %v1297
        %v1339 = vpack.c.bf16 %v1308, %v1305
        %v1340 = vpack.c.bf16 %v1316, %v1313
        %v1341 = vpack.c.bf16 %v1324, %v1321
        %v1342 = vpack.c.bf16 %v1332, %v1329
        %v1343 = vld [vmem:[#allocation2 + $0x130] sm:$0xf]
        %v1344 = vld [vmem:[#allocation2 + $0x134] sm:$0xf]
        %v1345 = vld [vmem:[#allocation2 + $0x138] sm:$0xf]
        %v1346 = vld [vmem:[#allocation2 + $0x13c] sm:$0xf]
        %v1347 = vld [vmem:[#allocation2 + $0x140] sm:$0xf]
        %v1348 = vld [vmem:[#allocation2 + $0x144] sm:$0xf]
        %v1349 = vld [vmem:[#allocation2 + $0x148] sm:$0xf]
        %v1350 = vld [vmem:[#allocation2 + $0x14c] sm:$0xf]
        %v1351 = vld [vmem:[#allocation2 + $0x150] sm:$0xf]
        %v1352 = vld [vmem:[#allocation2 + $0x154] sm:$0xf]
        %v1353 = vld [vmem:[#allocation2 + $0x158] sm:$0xf]
        %v1354 = vld [vmem:[#allocation2 + $0x15c] sm:$0xf]
        %v1355 = vld [vmem:[#allocation2 + $0x160] sm:$0xf]
        %v1356 = vld [vmem:[#allocation2 + $0x164] sm:$0xf]
        %v1357 = vld [vmem:[#allocation2 + $0x168] sm:$0xf]
        %v1358 = vld [vmem:[#allocation2 + $0x16c] sm:$0xf]
        %v1359 = vld [vmem:[#allocation2 + $0x170] sm:$0xf]
        %v1360 = vld [vmem:[#allocation2 + $0x174] sm:$0xf]
        %v1361 = vld [vmem:[#allocation2 + $0x178] sm:$0xf]
        %v1362 = vld [vmem:[#allocation2 + $0x17c] sm:$0xf]
        %v1363 = vld [vmem:[#allocation2 + $0x180] sm:$0xf]
        %v1364 = vld [vmem:[#allocation2 + $0x184] sm:$0xf]
        %v1365 = vld [vmem:[#allocation2 + $0x188] sm:$0xf]
        %v1366 = vld [vmem:[#allocation2 + $0x18c] sm:$0xf]
        %v1367 = vld [vmem:[#allocation2 + $0x190] sm:$0xf]
        %v1368 = vld [vmem:[#allocation2 + $0x194] sm:$0xf]
        %v1369 = vld [vmem:[#allocation2 + $0x198] sm:$0xf]
        %v1370 = vld [vmem:[#allocation2 + $0x19c] sm:$0xf]
        %v1371 = vld [vmem:[#allocation2 + $0x1a0] sm:$0xf]
        %v1372 = vld [vmem:[#allocation2 + $0x1a4] sm:$0xf]
        %v1373 = vld [vmem:[#allocation2 + $0x1a8] sm:$0xf]
        %v1374 = vld [vmem:[#allocation2 + $0x1ac] sm:$0xf]
        %v1391 = vunpack.c.l.b16 %v1359
        %v1392 = vunpack.c.l.b16 %v1360
        %v1393 = vunpack.c.l.b16 %v1361
        %v1394 = vunpack.c.l.b16 %v1362
        %v1395 = vunpack.c.l.b16 %v1363
        %v1396 = vunpack.c.l.b16 %v1364
        %v1397 = vunpack.c.l.b16 %v1365
        %v1398 = vunpack.c.l.b16 %v1366
        %v1399 = vunpack.c.l.b16 %v1367
        %v1400 = vunpack.c.l.b16 %v1368
        %v1401 = vunpack.c.l.b16 %v1369
        %v1402 = vunpack.c.l.b16 %v1370
        %v1403 = vunpack.c.l.b16 %v1371
        %v1404 = vunpack.c.l.b16 %v1372
        %v1405 = vunpack.c.l.b16 %v1373
        %v1406 = vunpack.c.l.b16 %v1374
        %v1407 = vpack.c.b16 %v1392, %v1391
        %v1408 = vpack.c.b16 %v1394, %v1393
        %v1409 = vpack.c.b16 %v1396, %v1395
        %v1410 = vpack.c.b16 %v1398, %v1397
        %v1411 = vpack.c.b16 %v1400, %v1399
        %v1412 = vpack.c.b16 %v1402, %v1401
        %v1413 = vpack.c.b16 %v1404, %v1403
        %v1414 = vpack.c.b16 %v1406, %v1405
        %1423 = vmatprep.subr.bf16.mxu0 0
        %1424 = vmatpush1.bf16.msra.mxu0 %v1414
        %1425 = vmatprep.subr.bf16.mxu0 0
        %1426 = vmatpush1.bf16.msra.mxu0 %v1413
        %1427 = vmatprep.subr.bf16.mxu0 0
        %1428 = vmatpush1.bf16.msra.mxu0 %v1412
        %1429 = vmatprep.subr.bf16.mxu0 0
        %1430 = vmatpush1.bf16.msra.mxu0 %v1411
        %1431 = vmatprep.subr.bf16.mxu0 0
        %1432 = vmatpush1.bf16.msra.mxu0 %v1410
        %1433 = vmatprep.subr.bf16.mxu0 0
        %1434 = vmatpush1.bf16.msra.mxu0 %v1409
        %1435 = vmatprep.subr.bf16.mxu0 0
        %1436 = vmatpush1.bf16.msra.mxu0 %v1408
        %1437 = vmatprep.subr.bf16.mxu0 0
        %1438 = vmatpush1.bf16.msra.mxu0 %v1407
        %1439 = vmatprep.subr.bf16.mxu0 0
        %1440 = vmatpush2.bf16.msra.mxu0 0
        %1441 = vmatprep.subr.bf16.mxu0 0
        %1442 = vmatpush2.bf16.msra.mxu0 0
        %1443 = vmatprep.subr.bf16.mxu0 0
        %1444 = vmatpush2.bf16.msra.mxu0 0
        %1445 = vmatprep.subr.bf16.mxu0 0
        %1446 = vmatpush2.bf16.msra.mxu0 0
        %1447 = vmatprep.subr.bf16.mxu0 0
        %1448 = vmatpush2.bf16.msra.mxu0 0
        %1449 = vmatprep.subr.bf16.mxu0 0
        %1450 = vmatpush2.bf16.msra.mxu0 0
        %1451 = vmatprep.subr.bf16.mxu0 0
        %1452 = vmatpush2.bf16.msra.mxu0 0
        %1453 = vmatprep.subr.bf16.mxu0 0
        %1454 = vmatpush2.bf16.msra.mxu0 0
        %1455 = vmatprep.mubr.bf16.mxu0 0
        %1456 = vmatmul.mubr.bf16.gmra.mxu0 %v1335
        %v1457 = vpop.f32.mrf.mxu0
        %v1458 = vadd.f32 0.0, %v1457
        %v1459 = vpop.f32.mrf.mxu0
        %v1460 = vpop.f32.mrf.mxu0
        %v1461 = vadd.f32 0.0, %v1460
        %v1462 = vpop.f32.mrf.mxu0
        %1463 = vmatprep.mubr.bf16.mxu0 0
        %1464 = vmatmul.mubr.bf16.gmra.mxu0 %v1336
        %v1465 = vpop.f32.mrf.mxu0
        %v1466 = vadd.f32 0.0, %v1465
        %v1467 = vpop.f32.mrf.mxu0
        %v1468 = vpop.f32.mrf.mxu0
        %v1469 = vadd.f32 0.0, %v1468
        %v1470 = vpop.f32.mrf.mxu0
        %1471 = vmatprep.mubr.bf16.mxu0 0
        %1472 = vmatmul.mubr.bf16.gmra.mxu0 %v1337
        %v1473 = vpop.f32.mrf.mxu0
        %v1474 = vadd.f32 0.0, %v1473
        %v1475 = vpop.f32.mrf.mxu0
        %v1476 = vpop.f32.mrf.mxu0
        %v1477 = vadd.f32 0.0, %v1476
        %v1478 = vpop.f32.mrf.mxu0
        %1479 = vmatprep.mubr.bf16.mxu0 0
        %1480 = vmatmul.mubr.bf16.gmra.mxu0 %v1338
        %v1481 = vpop.f32.mrf.mxu0
        %v1482 = vadd.f32 0.0, %v1481
        %v1483 = vpop.f32.mrf.mxu0
        %v1484 = vpop.f32.mrf.mxu0
        %v1485 = vadd.f32 0.0, %v1484
        %v1486 = vpop.f32.mrf.mxu0
        %1487 = vmatprep.mubr.bf16.mxu0 0
        %1488 = vmatmul.mubr.bf16.gmra.mxu0 %v1339
        %v1489 = vpop.f32.mrf.mxu0
        %v1490 = vadd.f32 0.0, %v1489
        %v1491 = vpop.f32.mrf.mxu0
        %v1492 = vpop.f32.mrf.mxu0
        %v1493 = vadd.f32 0.0, %v1492
        %v1494 = vpop.f32.mrf.mxu0
        %1495 = vmatprep.mubr.bf16.mxu0 0
        %1496 = vmatmul.mubr.bf16.gmra.mxu0 %v1340
        %v1497 = vpop.f32.mrf.mxu0
        %v1498 = vadd.f32 0.0, %v1497
        %v1499 = vpop.f32.mrf.mxu0
        %v1500 = vpop.f32.mrf.mxu0
        %v1501 = vadd.f32 0.0, %v1500
        %v1502 = vpop.f32.mrf.mxu0
        %1503 = vmatprep.mubr.bf16.mxu0 0
        %1504 = vmatmul.mubr.bf16.gmra.mxu0 %v1341
        %v1505 = vpop.f32.mrf.mxu0
        %v1506 = vadd.f32 0.0, %v1505
        %v1507 = vpop.f32.mrf.mxu0
        %v1508 = vpop.f32.mrf.mxu0
        %v1509 = vadd.f32 0.0, %v1508
        %v1510 = vpop.f32.mrf.mxu0
        %1511 = vmatprep.mubr.bf16.mxu0 0
        %1512 = vmatmul.mubr.bf16.gmra.mxu0 %v1342
        %v1513 = vpop.f32.mrf.mxu0
        %v1514 = vadd.f32 0.0, %v1513
        %v1515 = vpop.f32.mrf.mxu0
        %v1516 = vpop.f32.mrf.mxu0
        %v1517 = vadd.f32 0.0, %v1516
        %v1518 = vpop.f32.mrf.mxu0
        %1519 = vdwg.mxu0
        %v1536 = vunpack.c.l.b16 %v1343
        %v1537 = vunpack.c.l.b16 %v1344
        %v1538 = vunpack.c.l.b16 %v1345
        %v1539 = vunpack.c.l.b16 %v1346
        %v1540 = vunpack.c.l.b16 %v1347
        %v1541 = vunpack.c.l.b16 %v1348
        %v1542 = vunpack.c.l.b16 %v1349
        %v1543 = vunpack.c.l.b16 %v1350
        %v1544 = vunpack.c.l.b16 %v1351
        %v1545 = vunpack.c.l.b16 %v1352
        %v1546 = vunpack.c.l.b16 %v1353
        %v1547 = vunpack.c.l.b16 %v1354
        %v1548 = vunpack.c.l.b16 %v1355
        %v1549 = vunpack.c.l.b16 %v1356
        %v1550 = vunpack.c.l.b16 %v1357
        %v1551 = vunpack.c.l.b16 %v1358
        %v1552 = vpack.c.b16 %v1537, %v1536
        %v1553 = vpack.c.b16 %v1539, %v1538
        %v1554 = vpack.c.b16 %v1541, %v1540
        %v1555 = vpack.c.b16 %v1543, %v1542
        %v1556 = vpack.c.b16 %v1545, %v1544
        %v1557 = vpack.c.b16 %v1547, %v1546
        %v1558 = vpack.c.b16 %v1549, %v1548
        %v1559 = vpack.c.b16 %v1551, %v1550
        %1568 = vmatprep.subr.bf16.mxu0 0
        %1569 = vmatpush1.bf16.msra.mxu0 %v1559
        %1570 = vmatprep.subr.bf16.mxu0 0
        %1571 = vmatpush1.bf16.msra.mxu0 %v1558
        %1572 = vmatprep.subr.bf16.mxu0 0
        %1573 = vmatpush1.bf16.msra.mxu0 %v1557
        %1574 = vmatprep.subr.bf16.mxu0 0
        %1575 = vmatpush1.bf16.msra.mxu0 %v1556
        %1576 = vmatprep.subr.bf16.mxu0 0
        %1577 = vmatpush1.bf16.msra.mxu0 %v1555
        %1578 = vmatprep.subr.bf16.mxu0 0
        %1579 = vmatpush1.bf16.msra.mxu0 %v1554
        %1580 = vmatprep.subr.bf16.mxu0 0
        %1581 = vmatpush1.bf16.msra.mxu0 %v1553
        %1582 = vmatprep.subr.bf16.mxu0 0
        %1583 = vmatpush1.bf16.msra.mxu0 %v1552
        %1584 = vmatprep.subr.bf16.mxu0 0
        %1585 = vmatpush2.bf16.msra.mxu0 0
        %1586 = vmatprep.subr.bf16.mxu0 0
        %1587 = vmatpush2.bf16.msra.mxu0 0
        %1588 = vmatprep.subr.bf16.mxu0 0
        %1589 = vmatpush2.bf16.msra.mxu0 0
        %1590 = vmatprep.subr.bf16.mxu0 0
        %1591 = vmatpush2.bf16.msra.mxu0 0
        %1592 = vmatprep.subr.bf16.mxu0 0
        %1593 = vmatpush2.bf16.msra.mxu0 0
        %1594 = vmatprep.subr.bf16.mxu0 0
        %1595 = vmatpush2.bf16.msra.mxu0 0
        %1596 = vmatprep.subr.bf16.mxu0 0
        %1597 = vmatpush2.bf16.msra.mxu0 0
        %1598 = vmatprep.subr.bf16.mxu0 0
        %1599 = vmatpush2.bf16.msra.mxu0 0
        %1600 = vmatprep.mubr.bf16.mxu0 0
        %1601 = vmatmul.mubr.bf16.gmra.mxu0 %v1230
        %v1602 = vpop.f32.mrf.mxu0
        %v1603 = vadd.f32 %v1458, %v1602
        %v1604 = vpop.f32.mrf.mxu0
        %v1605 = vpop.f32.mrf.mxu0
        %v1606 = vadd.f32 %v1461, %v1605
        %v1607 = vpop.f32.mrf.mxu0
        %1608 = vmatprep.mubr.bf16.mxu0 0
        %1609 = vmatmul.mubr.bf16.gmra.mxu0 %v1231
        %v1610 = vpop.f32.mrf.mxu0
        %v1611 = vadd.f32 %v1466, %v1610
        %v1612 = vpop.f32.mrf.mxu0
        %v1613 = vpop.f32.mrf.mxu0
        %v1614 = vadd.f32 %v1469, %v1613
        %v1615 = vpop.f32.mrf.mxu0
        %1616 = vmatprep.mubr.bf16.mxu0 0
        %1617 = vmatmul.mubr.bf16.gmra.mxu0 %v1232
        %v1618 = vpop.f32.mrf.mxu0
        %v1619 = vadd.f32 %v1474, %v1618
        %v1620 = vpop.f32.mrf.mxu0
        %v1621 = vpop.f32.mrf.mxu0
        %v1622 = vadd.f32 %v1477, %v1621
        %v1623 = vpop.f32.mrf.mxu0
        %1624 = vmatprep.mubr.bf16.mxu0 0
        %1625 = vmatmul.mubr.bf16.gmra.mxu0 %v1233
        %v1626 = vpop.f32.mrf.mxu0
        %v1627 = vadd.f32 %v1482, %v1626
        %v1628 = vpop.f32.mrf.mxu0
        %v1629 = vpop.f32.mrf.mxu0
        %v1630 = vadd.f32 %v1485, %v1629
        %v1631 = vpop.f32.mrf.mxu0
        %1632 = vmatprep.mubr.bf16.mxu0 0
        %1633 = vmatmul.mubr.bf16.gmra.mxu0 %v1234
        %v1634 = vpop.f32.mrf.mxu0
        %v1635 = vadd.f32 %v1490, %v1634
        %v1636 = vpop.f32.mrf.mxu0
        %v1637 = vpop.f32.mrf.mxu0
        %v1638 = vadd.f32 %v1493, %v1637
        %v1639 = vpop.f32.mrf.mxu0
        %1640 = vmatprep.mubr.bf16.mxu0 0
        %1641 = vmatmul.mubr.bf16.gmra.mxu0 %v1235
        %v1642 = vpop.f32.mrf.mxu0
        %v1643 = vadd.f32 %v1498, %v1642
        %v1644 = vpop.f32.mrf.mxu0
        %v1645 = vpop.f32.mrf.mxu0
        %v1646 = vadd.f32 %v1501, %v1645
        %v1647 = vpop.f32.mrf.mxu0
        %1648 = vmatprep.mubr.bf16.mxu0 0
        %1649 = vmatmul.mubr.bf16.gmra.mxu0 %v1236
        %v1650 = vpop.f32.mrf.mxu0
        %v1651 = vadd.f32 %v1506, %v1650
        %v1652 = vpop.f32.mrf.mxu0
        %v1653 = vpop.f32.mrf.mxu0
        %v1654 = vadd.f32 %v1509, %v1653
        %v1655 = vpop.f32.mrf.mxu0
        %1656 = vmatprep.mubr.bf16.mxu0 0
        %1657 = vmatmul.mubr.bf16.gmra.mxu0 %v1237
        %v1658 = vpop.f32.mrf.mxu0
        %v1659 = vadd.f32 %v1514, %v1658
        %v1660 = vpop.f32.mrf.mxu0
        %v1661 = vpop.f32.mrf.mxu0
        %v1662 = vadd.f32 %v1517, %v1661
        %v1663 = vpop.f32.mrf.mxu0
        %1664 = vdwg.mxu0
        %v1665 = vld [vmem:[#allocation2 + $0x1b0] sm:$0xf]
        %v1666 = vunpack.c.l.bf16 %v1665
        %v1667 = vlaneseq
        %v1668 = vshrl.u32 %v1667, 7
        %v1669 = vsub.s32 0, %v1668
        %v1670 = vrot.slane %v1666, %v1669
        %v1671 = vadd.f32 %v1603, %v1670
        %v1672 = vadd.f32 %v1606, %v1670
        %v1673 = vadd.f32 %v1611, %v1670
        %v1674 = vadd.f32 %v1614, %v1670
        %v1675 = vadd.f32 %v1619, %v1670
        %v1676 = vadd.f32 %v1622, %v1670
        %v1677 = vadd.f32 %v1627, %v1670
        %v1678 = vadd.f32 %v1630, %v1670
        %v1679 = vadd.f32 %v1635, %v1670
        %v1680 = vadd.f32 %v1638, %v1670
        %v1681 = vadd.f32 %v1643, %v1670
        %v1682 = vadd.f32 %v1646, %v1670
        %v1683 = vadd.f32 %v1651, %v1670
        %v1684 = vadd.f32 %v1654, %v1670
        %v1685 = vadd.f32 %v1659, %v1670
        %v1686 = vadd.f32 %v1662, %v1670
        %v1687 = vmax.f32 %v1671, 0.0
        %v1688 = vmax.f32 %v1672, 0.0
        %v1689 = vmax.f32 %v1673, 0.0
        %v1690 = vmax.f32 %v1674, 0.0
        %v1691 = vmax.f32 %v1675, 0.0
        %v1692 = vmax.f32 %v1676, 0.0
        %v1693 = vmax.f32 %v1677, 0.0
        %v1694 = vmax.f32 %v1678, 0.0
        %v1695 = vmax.f32 %v1679, 0.0
        %v1696 = vmax.f32 %v1680, 0.0
        %v1697 = vmax.f32 %v1681, 0.0
        %v1698 = vmax.f32 %v1682, 0.0
        %v1699 = vmax.f32 %v1683, 0.0
        %v1700 = vmax.f32 %v1684, 0.0
        %v1701 = vmax.f32 %v1685, 0.0
        %v1702 = vmax.f32 %v1686, 0.0
        %v1703 = vpack.c.bf16 %v1688, %v1687
        %v1704 = vpack.c.bf16 %v1690, %v1689
        %v1705 = vpack.c.bf16 %v1692, %v1691
        %v1706 = vpack.c.bf16 %v1694, %v1693
        %v1707 = vpack.c.bf16 %v1696, %v1695
        %v1708 = vpack.c.bf16 %v1698, %v1697
        %v1709 = vpack.c.bf16 %v1700, %v1699
        %v1710 = vpack.c.bf16 %v1702, %v1701
        %v1711 = vld [vmem:[#allocation2 + $0x1b8] sm:$0xf]
        %v1712 = vld [vmem:[#allocation2 + $0x1bc] sm:$0xf]
        %v1713 = vld [vmem:[#allocation2 + $0x1c0] sm:$0xf]
        %v1714 = vld [vmem:[#allocation2 + $0x1c4] sm:$0xf]
        %v1715 = vld [vmem:[#allocation2 + $0x1c8] sm:$0xf]
        %v1716 = vld [vmem:[#allocation2 + $0x1cc] sm:$0xf]
        %v1717 = vld [vmem:[#allocation2 + $0x1d0] sm:$0xf]
        %v1718 = vld [vmem:[#allocation2 + $0x1d4] sm:$0xf]
        %v1719 = vld [vmem:[#allocation2 + $0x1d8] sm:$0xf]
        %v1720 = vld [vmem:[#allocation2 + $0x1dc] sm:$0xf]
        %v1721 = vld [vmem:[#allocation2 + $0x1e0] sm:$0xf]
        %v1722 = vld [vmem:[#allocation2 + $0x1e4] sm:$0xf]
        %v1723 = vld [vmem:[#allocation2 + $0x1e8] sm:$0xf]
        %v1724 = vld [vmem:[#allocation2 + $0x1ec] sm:$0xf]
        %v1725 = vld [vmem:[#allocation2 + $0x1f0] sm:$0xf]
        %v1726 = vld [vmem:[#allocation2 + $0x1f4] sm:$0xf]
        %v1743 = vunpack.c.l.b16 %v1711
        %v1744 = vunpack.c.l.b16 %v1712
        %v1745 = vunpack.c.l.b16 %v1713
        %v1746 = vunpack.c.l.b16 %v1714
        %v1747 = vunpack.c.l.b16 %v1715
        %v1748 = vunpack.c.l.b16 %v1716
        %v1749 = vunpack.c.l.b16 %v1717
        %v1750 = vunpack.c.l.b16 %v1718
        %v1751 = vunpack.c.l.b16 %v1719
        %v1752 = vunpack.c.l.b16 %v1720
        %v1753 = vunpack.c.l.b16 %v1721
        %v1754 = vunpack.c.l.b16 %v1722
        %v1755 = vunpack.c.l.b16 %v1723
        %v1756 = vunpack.c.l.b16 %v1724
        %v1757 = vunpack.c.l.b16 %v1725
        %v1758 = vunpack.c.l.b16 %v1726
        %v1759 = vpack.c.b16 %v1744, %v1743
        %v1760 = vpack.c.b16 %v1746, %v1745
        %v1761 = vpack.c.b16 %v1748, %v1747
        %v1762 = vpack.c.b16 %v1750, %v1749
        %v1763 = vpack.c.b16 %v1752, %v1751
        %v1764 = vpack.c.b16 %v1754, %v1753
        %v1765 = vpack.c.b16 %v1756, %v1755
        %v1766 = vpack.c.b16 %v1758, %v1757
        %1775 = vmatprep.subr.bf16.mxu0 0
        %1776 = vmatpush1.bf16.msra.mxu0 %v1766
        %1777 = vmatprep.subr.bf16.mxu0 0
        %1778 = vmatpush1.bf16.msra.mxu0 %v1765
        %1779 = vmatprep.subr.bf16.mxu0 0
        %1780 = vmatpush1.bf16.msra.mxu0 %v1764
        %1781 = vmatprep.subr.bf16.mxu0 0
        %1782 = vmatpush1.bf16.msra.mxu0 %v1763
        %1783 = vmatprep.subr.bf16.mxu0 0
        %1784 = vmatpush1.bf16.msra.mxu0 %v1762
        %1785 = vmatprep.subr.bf16.mxu0 0
        %1786 = vmatpush1.bf16.msra.mxu0 %v1761
        %1787 = vmatprep.subr.bf16.mxu0 0
        %1788 = vmatpush1.bf16.msra.mxu0 %v1760
        %1789 = vmatprep.subr.bf16.mxu0 0
        %1790 = vmatpush1.bf16.msra.mxu0 %v1759
        %1791 = vmatprep.subr.bf16.mxu0 0
        %1792 = vmatpush2.bf16.msra.mxu0 0
        %1793 = vmatprep.subr.bf16.mxu0 0
        %1794 = vmatpush2.bf16.msra.mxu0 0
        %1795 = vmatprep.subr.bf16.mxu0 0
        %1796 = vmatpush2.bf16.msra.mxu0 0
        %1797 = vmatprep.subr.bf16.mxu0 0
        %1798 = vmatpush2.bf16.msra.mxu0 0
        %1799 = vmatprep.subr.bf16.mxu0 0
        %1800 = vmatpush2.bf16.msra.mxu0 0
        %1801 = vmatprep.subr.bf16.mxu0 0
        %1802 = vmatpush2.bf16.msra.mxu0 0
        %1803 = vmatprep.subr.bf16.mxu0 0
        %1804 = vmatpush2.bf16.msra.mxu0 0
        %1805 = vmatprep.subr.bf16.mxu0 0
        %1806 = vmatpush2.bf16.msra.mxu0 0
        %1807 = vmatprep.mubr.bf16.mxu0 0
        %1808 = vmatmul.mubr.bf16.gmra.mxu0 %v1703
        %v1809 = vpop.f32.mrf.mxu0
        %v1810 = vadd.f32 0.0, %v1809
        %v1811 = vpop.f32.mrf.mxu0
        %v1812 = vpop.f32.mrf.mxu0
        %v1813 = vadd.f32 0.0, %v1812
        %v1814 = vpop.f32.mrf.mxu0
        %1815 = vmatprep.mubr.bf16.mxu0 0
        %1816 = vmatmul.mubr.bf16.gmra.mxu0 %v1704
        %v1817 = vpop.f32.mrf.mxu0
        %v1818 = vadd.f32 0.0, %v1817
        %v1819 = vpop.f32.mrf.mxu0
        %v1820 = vpop.f32.mrf.mxu0
        %v1821 = vadd.f32 0.0, %v1820
        %v1822 = vpop.f32.mrf.mxu0
        %1823 = vmatprep.mubr.bf16.mxu0 0
        %1824 = vmatmul.mubr.bf16.gmra.mxu0 %v1705
        %v1825 = vpop.f32.mrf.mxu0
        %v1826 = vadd.f32 0.0, %v1825
        %v1827 = vpop.f32.mrf.mxu0
        %v1828 = vpop.f32.mrf.mxu0
        %v1829 = vadd.f32 0.0, %v1828
        %v1830 = vpop.f32.mrf.mxu0
        %1831 = vmatprep.mubr.bf16.mxu0 0
        %1832 = vmatmul.mubr.bf16.gmra.mxu0 %v1706
        %v1833 = vpop.f32.mrf.mxu0
        %v1834 = vadd.f32 0.0, %v1833
        %v1835 = vpop.f32.mrf.mxu0
        %v1836 = vpop.f32.mrf.mxu0
        %v1837 = vadd.f32 0.0, %v1836
        %v1838 = vpop.f32.mrf.mxu0
        %1839 = vmatprep.mubr.bf16.mxu0 0
        %1840 = vmatmul.mubr.bf16.gmra.mxu0 %v1707
        %v1841 = vpop.f32.mrf.mxu0
        %v1842 = vadd.f32 0.0, %v1841
        %v1843 = vpop.f32.mrf.mxu0
        %v1844 = vpop.f32.mrf.mxu0
        %v1845 = vadd.f32 0.0, %v1844
        %v1846 = vpop.f32.mrf.mxu0
        %1847 = vmatprep.mubr.bf16.mxu0 0
        %1848 = vmatmul.mubr.bf16.gmra.mxu0 %v1708
        %v1849 = vpop.f32.mrf.mxu0
        %v1850 = vadd.f32 0.0, %v1849
        %v1851 = vpop.f32.mrf.mxu0
        %v1852 = vpop.f32.mrf.mxu0
        %v1853 = vadd.f32 0.0, %v1852
        %v1854 = vpop.f32.mrf.mxu0
        %1855 = vmatprep.mubr.bf16.mxu0 0
        %1856 = vmatmul.mubr.bf16.gmra.mxu0 %v1709
        %v1857 = vpop.f32.mrf.mxu0
        %v1858 = vadd.f32 0.0, %v1857
        %v1859 = vpop.f32.mrf.mxu0
        %v1860 = vpop.f32.mrf.mxu0
        %v1861 = vadd.f32 0.0, %v1860
        %v1862 = vpop.f32.mrf.mxu0
        %1863 = vmatprep.mubr.bf16.mxu0 0
        %1864 = vmatmul.mubr.bf16.gmra.mxu0 %v1710
        %v1865 = vpop.f32.mrf.mxu0
        %v1866 = vadd.f32 0.0, %v1865
        %v1867 = vpop.f32.mrf.mxu0
        %v1868 = vpop.f32.mrf.mxu0
        %v1869 = vadd.f32 0.0, %v1868
        %v1870 = vpop.f32.mrf.mxu0
        %1871 = vdwg.mxu0
        %v1872 = vld [vmem:[#allocation2 + $0x40] sm:$0xf]
        %v1873 = vld [vmem:[#allocation2 + $0x44] sm:$0xf]
        %v1874 = vld [vmem:[#allocation2 + $0x48] sm:$0xf]
        %v1875 = vld [vmem:[#allocation2 + $0x4c] sm:$0xf]
        %v1876 = vunpack.c.l.bf16 %v1872
        %v1877 = vunpack.c.l.bf16 %v1873
        %v1878 = vunpack.c.l.bf16 %v1874
        %v1879 = vunpack.c.l.bf16 %v1875
        %v1880 = vld [vmem:[#allocation2 + $0x1f8] sm:$0xf]
        %v1881 = vunpack.c.l.bf16 %v1880
        %v1882 = vlaneseq
        %v1883 = vshrl.u32 %v1882, 7
        %v1884 = vsub.s32 0, %v1883
        %v1885 = vrot.slane %v1881, %v1884
        %1886 = vmatprep.subr.mxu0 0.0
        %1887 = vmatpush1.msra.mxu0 %v1869
        %1888 = vmatprep.subr.mxu0 0.0
        %1889 = vmatpush1.msra.mxu0 %v1866
        %1890 = vmatprep.subr.mxu0 0.0
        %1891 = vmatpush1.msra.mxu0 %v1861
        %1892 = vmatprep.subr.mxu0 0.0
        %1893 = vmatpush1.msra.mxu0 %v1858
        %1894 = vmatprep.subr.mxu0 0.0
        %1895 = vmatpush1.msra.mxu0 %v1853
        %1896 = vmatprep.subr.mxu0 0.0
        %1897 = vmatpush1.msra.mxu0 %v1850
        %1898 = vmatprep.subr.mxu0 0.0
        %1899 = vmatpush1.msra.mxu0 %v1845
        %1900 = vmatprep.subr.mxu0 0.0
        %1901 = vmatpush1.msra.mxu0 %v1842
        %1902 = vmatprep.subr.mxu0 0.0
        %1903 = vmatpush1.msra.mxu0 %v1837
        %1904 = vmatprep.subr.mxu0 0.0
        %1905 = vmatpush1.msra.mxu0 %v1834
        %1906 = vmatprep.subr.mxu0 0.0
        %1907 = vmatpush1.msra.mxu0 %v1829
        %1908 = vmatprep.subr.mxu0 0.0
        %1909 = vmatpush1.msra.mxu0 %v1826
        %1910 = vmatprep.subr.mxu0 0.0
        %1911 = vmatpush1.msra.mxu0 %v1821
        %1912 = vmatprep.subr.mxu0 0.0
        %1913 = vmatpush1.msra.mxu0 %v1818
        %1914 = vmatprep.subr.mxu0 0.0
        %1915 = vmatpush1.msra.mxu0 %v1813
        %1916 = vmatprep.subr.mxu0 0.0
        %1917 = vmatpush1.msra.mxu0 %v1810
        %1918 = vmatprep.subr.mxu0 0.0
        %1919 = vmatpush2.msra.mxu0 0.0
        %1920 = vmatprep.subr.mxu0 0.0
        %1921 = vmatpush2.msra.mxu0 0.0
        %1922 = vmatprep.subr.mxu0 0.0
        %1923 = vmatpush2.msra.mxu0 0.0
        %1924 = vmatprep.subr.mxu0 0.0
        %1925 = vmatpush2.msra.mxu0 0.0
        %1926 = vmatprep.subr.mxu0 0.0
        %1927 = vmatpush2.msra.mxu0 0.0
        %1928 = vmatprep.subr.mxu0 0.0
        %1929 = vmatpush2.msra.mxu0 0.0
        %1930 = vmatprep.subr.mxu0 0.0
        %1931 = vmatpush2.msra.mxu0 0.0
        %1932 = vmatprep.subr.mxu0 0.0
        %1933 = vmatpush2.msra.mxu0 0.0
        %1934 = vmatprep.subr.mxu0 0.0
        %1935 = vmatpush2.msra.mxu0 0.0
        %1936 = vmatprep.subr.mxu0 0.0
        %1937 = vmatpush2.msra.mxu0 0.0
        %1938 = vmatprep.subr.mxu0 0.0
        %1939 = vmatpush2.msra.mxu0 0.0
        %1940 = vmatprep.subr.mxu0 0.0
        %1941 = vmatpush2.msra.mxu0 0.0
        %1942 = vmatprep.subr.mxu0 0.0
        %1943 = vmatpush2.msra.mxu0 0.0
        %1944 = vmatprep.subr.mxu0 0.0
        %1945 = vmatpush2.msra.mxu0 0.0
        %1946 = vmatprep.subr.mxu0 0.0
        %1947 = vmatpush2.msra.mxu0 0.0
        %1948 = vmatprep.subr.mxu0 0.0
        %1949 = vmatpush2.msra.mxu0 0.0
        %1950 = vmatprep.mubr.f32.mxu0 0.0
        %1951 = vmatmul.mubr.f32.gmra.mxu0 %v1876
        %v1952 = vpop.f32.mrf.mxu0
        %v1953 = vadd.f32 %v1885, %v1952
        %v1954 = vpop.f32.mrf.mxu0
        %1955 = vmatprep.mubr.f32.mxu0 0.0
        %1956 = vmatmul.mubr.f32.gmra.mxu0 %v1877
        %v1957 = vpop.f32.mrf.mxu0
        %v1958 = vadd.f32 %v1885, %v1957
        %v1959 = vpop.f32.mrf.mxu0
        %1960 = vmatprep.mubr.f32.mxu0 0.0
        %1961 = vmatmul.mubr.f32.gmra.mxu0 %v1878
        %v1962 = vpop.f32.mrf.mxu0
        %v1963 = vadd.f32 %v1885, %v1962
        %v1964 = vpop.f32.mrf.mxu0
        %1965 = vmatprep.mubr.f32.mxu0 0.0
        %1966 = vmatmul.mubr.f32.gmra.mxu0 %v1879
        %v1967 = vpop.f32.mrf.mxu0
        %v1968 = vadd.f32 %v1885, %v1967
        %v1969 = vpop.f32.mrf.mxu0
        %1970 = vdwg.mxu0
        %1971 = vmax.xlane.f32.xlu0 %v1953
        %v1972 = vpop.xlane.xlu0 %1971
        %1973 = vmax.xlane.f32.xlu0 %v1958
        %v1974 = vpop.xlane.xlu0 %1973
        %1975 = vmax.xlane.f32.xlu0 %v1963
        %v1976 = vpop.xlane.xlu0 %1975
        %1977 = vmax.xlane.f32.xlu0 %v1968
        %v1978 = vpop.xlane.xlu0 %1977
        %v1979 = vsub.f32 %v1953, %v1972
        %v1980 = vsub.f32 %v1958, %v1974
        %v1981 = vsub.f32 %v1963, %v1976
        %v1982 = vsub.f32 %v1968, %v1978
        %v1983 = vmul.f32 %v1979, 1.442695
        %v1984 = vpow.pop %v1983
        %v1985 = vmul.f32 %v1980, 1.442695
        %v1986 = vpow.pop %v1985
        %v1987 = vmul.f32 %v1981, 1.442695
        %v1988 = vpow.pop %v1987
        %v1989 = vmul.f32 %v1982, 1.442695
        %v1990 = vpow.pop %v1989
        %1991 = vadd.xlane.f32.xlu0 %v1984
        %v1992 = vpop.xlane.xlu0 %1991
        %1993 = vadd.xlane.f32.xlu0 %v1986
        %v1994 = vpop.xlane.xlu0 %1993
        %1995 = vadd.xlane.f32.xlu0 %v1988
        %v1996 = vpop.xlane.xlu0 %1995
        %1997 = vadd.xlane.f32.xlu0 %v1990
        %v1998 = vpop.xlane.xlu0 %1997
        %v1999 = vlog2.pop %v1992
        %v2000 = vmul.f32 %v1999, 0.6931472
        %v2001 = vlog2.pop %v1994
        %v2002 = vmul.f32 %v2001, 0.6931472
        %v2003 = vlog2.pop %v1996
        %v2004 = vmul.f32 %v2003, 0.6931472
        %v2005 = vlog2.pop %v1998
        %v2006 = vmul.f32 %v2005, 0.6931472
        %v2007 = vsub.f32 %v1979, %v2000
        %v2008 = vsub.f32 %v1980, %v2002
        %v2009 = vsub.f32 %v1981, %v2004
        %v2010 = vsub.f32 %v1982, %v2006
        %2011 = vst [vmem:[%s160] sm:$0xff] %v2007
        %2012 = vst [vmem:[%s160 + $0x8] sm:$0xff] %v2008
        %2013 = vst [vmem:[%s160 + $0x10] sm:$0xff] %v2009
        %2014 = vst [vmem:[%s160 + $0x18] sm:$0xff] %v2010
        %s2015 = smul.u32 4, %s14
        %p2016 = scmp.lt.s32.totalorder %s2015, 7
        %s2017 = scalar_select %p2016, %s2015, 7
        %s2018 = smul.addr %s2017, 8
        %s2019 = scalar_lea.vmem %s2, %s2018
        // Predicated region
        $region33: #{net_forward.1} parent=27 // pred_check
          %p2020 = pneg %p79
        $region34: #{net_forward.1} parent=27 // pred_check_branch
          %2022 = sbr.rel (%p2020) target = $region36
        $region35: #{net_forward.1} parent=27 // pred_region
          %s2023 = smul.u32 4, %s14
        $region36: #{net_forward.1} parent=27 // pred_fallthru
          _
      $region28: #{net_forward.1} parent=5 // pred_fallthru
        _
      %p2024 = scmp.le.s32.totalorder 2, %s9
      // Predicated region
      $region37: #{net_forward.1} parent=5 // pred_check
        %p2025 = pneg %p2024
      $region38: #{net_forward.1} parent=5 // pred_check_branch
        %2027 = sbr.rel (%p2025) target = $region40
      $region39: #{net_forward.1} parent=5 // pred_region
        %s2028 = ssub.s32 %s9, 2
        // Predicated region
        $region41: #{net_forward.1} parent=39 // pred_check
          %p2029 = pneg %p85
        $region42: #{net_forward.1} parent=39 // pred_check_branch
          %2031 = sbr.rel (%p2029) target = $region44
        $region43: #{net_forward.1} parent=39 // pred_region
          %s2032 = smul.u32 4, %s15
          %p2033 = scmp.lt.s32.totalorder %s2032, 7
          %s2034 = scalar_select %p2033, %s2032, 7
          %s2035 = smul.addr %s2034, 8
          %s2036 = scalar_lea.vmem %s2, %s2035
        $region44: #{net_forward.1} parent=39 // pred_fallthru
          _
      $region40: #{net_forward.1} parent=5 // pred_fallthru
        _
    $region6: #{net_forward.1} parent=1 // loop_footer
      %s13 = sadd.s32 1, %s9
    $region7: #{net_forward.1} parent=1 // loop_footer_branch
      %8 = sbr.rel target = $region3
    $region8: #{net_forward.1} parent=1 // loop_exit
      _
    %2037 = vsyncpa [#allocation3], 1
    %s2038 = scalar_lea.sflag [#allocation3], 1
    %2039 = vsyncpa %s2038, 1

</llo_original>
